<compile_context>
chip_gen: v5e
topology: v5e:2x2
jax: 0.10.0
libtpu: 0.0.40
codegen_flags: <defaults>
</compile_context>

<pallas_src>
import math
import jax
import jax.numpy as jnp
from jax import lax
from jax.experimental import pallas as pl
from jax.experimental.pallas import tpu as pltpu


def _mha_kernel(x_ref, wqkv_ref, wproj_ref, bproj_ref, o_ref, *, n_heads, depth):
    # x_ref:     (1, N, C)  f32
    # wqkv_ref:  (3C, C)    f32  (PyTorch layout: out_features x in_features)
    # wproj_ref: (C, C)     f32  (PyTorch layout)
    # bproj_ref: (1, C)     f32
    # o_ref:     (1, N, C)  f32
    N = x_ref.shape[1]
    C = n_heads * depth
    scale = depth ** -0.5

    x = x_ref[0]                                                    # (N, C) f32

    # ---- Fused QKV projection on the MXU: qkv^T = W_qkv @ x^T -------------
    # Contract the C axis of both operands ((1,),(1,)): no transpose is ever
    # materialized; accumulation is f32.
    qkv_t = lax.dot_general(
        wqkv_ref[...], x,
        dimension_numbers=(((1,), (1,)), ((), ())),
        preferred_element_type=jnp.float32)                         # (3C, N) f32

    # ---- Head split: purely leading-dim reshape + slices (no relayout) ----
    # Row index g*d + j == i3*C + h*d + j matches PyTorch's
    # reshape(B, N, 3, H, d) feature ordering exactly.
    qkv_t = qkv_t.reshape(3 * n_heads, depth, N)                    # (3H, d, N)
    q_t = qkv_t[0:n_heads]                                          # (H, d, N)
    k_t = qkv_t[n_heads:2 * n_heads]                                # (H, d, N)
    v_t = qkv_t[2 * n_heads:3 * n_heads]                            # (H, d, N)

    # q needs (H, N, d) orientation for the standard batched contraction; the
    # 1/sqrt(d) scale is folded into q.
    q = jnp.swapaxes(q_t, 1, 2) * scale                             # (H, N, d)

    # ---- Scaled dot-product attention, batched over heads -----------------
    s = jnp.einsum("hqd,hdk->hqk", q, k_t,
                   preferred_element_type=jnp.float32)              # (H, N, N) f32
    m = jnp.max(s, axis=-1, keepdims=True)
    p = jnp.exp(s - m)
    l = jnp.sum(p, axis=-1, keepdims=True)
    p = p / l                                                       # f32 softmax

    # attn^T per head: contraction over keys (last dim of both operands).
    attn_t = jnp.einsum("hdk,hqk->hdq", v_t, p,
                        preferred_element_type=jnp.float32)         # (H, d, N) f32

    # ---- Merge heads (free leading-dim merge) + output projection ---------
    attn_m = attn_t.reshape(C, N)                                   # (C, N); row = h*d + j
    y_t = jnp.dot(wproj_ref[...], attn_m,
                  preferred_element_type=jnp.float32)               # (C, N) f32
    y = y_t.T + bproj_ref[0]                                        # (N, C) f32, lane-dense
    o_ref[0] = y.astype(o_ref.dtype)


def mha_pallas(x, w_qkv, w_proj, b_proj, *, n_heads):
    """x: (B, N, C). w_qkv: (3C, C) (PyTorch layout). w_proj: (C, C). b_proj: (C,)."""
    B, N, C = x.shape
    assert C % n_heads == 0
    depth = C // n_heads
    out_dtype = x.dtype

    x_f = x.astype(jnp.float32)
    w_qkv_f = w_qkv.astype(jnp.float32)          # (3C, C)
    w_proj_f = w_proj.astype(jnp.float32)        # (C, C)
    b2 = b_proj.reshape(1, C).astype(jnp.float32)

    kernel = lambda *refs: _mha_kernel(*refs, n_heads=n_heads, depth=depth)

    return pl.pallas_call(
        kernel,
        out_shape=jax.ShapeDtypeStruct((B, N, C), out_dtype),
        grid_spec=pltpu.PrefetchScalarGridSpec(
            num_scalar_prefetch=0,
            grid=(B,),
            in_specs=[
                pl.BlockSpec((1, N, C), lambda b: (b, 0, 0)),        # x
                pl.BlockSpec((3 * C, C), lambda b: (0, 0)),          # W_qkv (resident)
                pl.BlockSpec((C, C), lambda b: (0, 0)),              # W_proj (resident)
                pl.BlockSpec((1, C), lambda b: (0, 0)),              # b_proj
            ],
            out_specs=pl.BlockSpec((1, N, C), lambda b: (b, 0, 0)),
        ),
        compiler_params=pltpu.CompilerParams(
            dimension_semantics=("parallel",),
            # Safe on every generation (v5e/v6e/v7x); tune upward together with
            # flash-style N tiling for production shapes.
            vmem_limit_bytes=32 * 1024 * 1024,
        ),
    )(x_f, w_qkv_f, w_proj_f, b2)


def mha_reference(x, w_qkv, w_proj, b_proj, *, n_heads):
    B, N, C = x.shape
    depth = C // n_heads
    qkv = jnp.einsum("bnc,oc->bno", x, w_qkv)                      # (B, N, 3C)
    qkv = qkv.reshape(B, N, 3, n_heads, depth).transpose(2, 0, 3, 1, 4)
    q, k, v = qkv[0], qkv[1], qkv[2]                               # (B, H, N, d)
    s = jnp.einsum("bhqd,bhkd->bhqk", q, k) * (depth ** -0.5)
    p = jax.nn.softmax(s, axis=-1)
    o = jnp.einsum("bhqk,bhkd->bhqd", p, v)
    o = o.transpose(0, 2, 1, 3).reshape(B, N, C)
    return jnp.einsum("bnc,oc->bno", o, w_proj) + b_proj


if __name__ == "__main__":
    # Small but layout-friendly config: head depth = 128 (one full lane tile),
    # so every in-kernel reshape/slice stays tile-aligned.
    d_model, n_heads = 256, 2
    B, N = 2, 16

    key = jax.random.PRNGKey(0)
    k1, k2, k3, k4 = jax.random.split(key, 4)
    x = jax.random.normal(k1, (B, N, d_model), dtype=jnp.float32)
    bound = 1.0 / math.sqrt(d_model)            # nn.Linear-style uniform init
    w_qkv = jax.random.uniform(k2, (3 * d_model, d_model), jnp.float32, -bound, bound)
    w_proj = jax.random.uniform(k3, (d_model, d_model), jnp.float32, -bound, bound)
    b_proj = jax.random.uniform(k4, (d_model,), jnp.float32, -bound, bound)

    out = mha_pallas(x, w_qkv, w_proj, b_proj, n_heads=n_heads)
    out = jax.block_until_ready(out)

    ref = mha_reference(x, w_qkv, w_proj, b_proj, n_heads=n_heads)
    assert out.shape == (B, N, d_model)
    err = float(jnp.max(jnp.abs(out - ref)))
    assert jnp.allclose(out, ref, atol=1e-3, rtol=1e-3), f"max abs err {err}"
    print("KERNEL_OK")
</pallas_src>

<mosaic_0001>
module attributes {stable_mosaic.version = 11 : i64} {
  func.func @_lambda_(%arg0: i32, %arg1: memref<1x16x256xf32, #tpu.memory_space<vmem>>, %arg2: memref<768x256xf32, #tpu.memory_space<vmem>>, %arg3: memref<256x256xf32, #tpu.memory_space<vmem>>, %arg4: memref<1x256xf32, #tpu.memory_space<vmem>>, %arg5: memref<1x16x256xf32, #tpu.memory_space<vmem>>) attributes {dimension_semantics = [#tpu.dimension_semantics<parallel>], iteration_bounds = array<i64: 2>, scalar_prefetch = 0 : i64, scratch_operands = 0 : i64, tpu.core_type = #tpu.core_type<tc>, window_params = [{transform_indices = @transform_0, window_bounds = array<i64: 1, 16, 256>}, {pipeline_mode = #tpu.pipeline_mode<synchronous>, transform_indices = @transform_1, window_bounds = array<i64: 768, 256>}, {pipeline_mode = #tpu.pipeline_mode<synchronous>, transform_indices = @transform_2, window_bounds = array<i64: 256, 256>}, {pipeline_mode = #tpu.pipeline_mode<synchronous>, transform_indices = @transform_3, window_bounds = array<i64: 1, 256>}, {transform_indices = @transform_4, window_bounds = array<i64: 1, 16, 256>}]} {
    %c0 = arith.constant 0 : index
    %c0_0 = arith.constant 0 : index
    %c0_1 = arith.constant 0 : index
    %0 = vector.load %arg1[%c0, %c0_0, %c0_1] : memref<1x16x256xf32, #tpu.memory_space<vmem>>, vector<1x16x256xf32>
    %1 = vector.shape_cast %0 : vector<1x16x256xf32> to vector<16x256xf32>
    %c0_2 = arith.constant 0 : index
    %c0_3 = arith.constant 0 : index
    %2 = vector.load %arg2[%c0_2, %c0_3] : memref<768x256xf32, #tpu.memory_space<vmem>>, vector<768x256xf32>
    %cst = arith.constant dense<0.000000e+00> : vector<768x16xf32>
    %3 = tpu.matmul %2, %1, %cst {dimension_numbers = #tpu.dot_dimension_numbers<[1], [1], [0], [0], [0, 0, 1, 0], [], []>} : vector<768x256xf32>, vector<16x256xf32>, vector<768x16xf32> -> vector<768x16xf32>
    %4 = vector.shape_cast %3 : vector<768x16xf32> to vector<6x128x16xf32>
    %5 = vector.extract_strided_slice %4 {offsets = [0, 0, 0], sizes = [2, 128, 16], strides = [1, 1, 1]} : vector<6x128x16xf32> to vector<2x128x16xf32>
    %6 = vector.extract_strided_slice %4 {offsets = [2, 0, 0], sizes = [2, 128, 16], strides = [1, 1, 1]} : vector<6x128x16xf32> to vector<2x128x16xf32>
    %7 = vector.extract_strided_slice %4 {offsets = [4, 0, 0], sizes = [2, 128, 16], strides = [1, 1, 1]} : vector<6x128x16xf32> to vector<2x128x16xf32>
    %8 = tpu.transpose %5, [0, 2, 1] : vector<2x128x16xf32> -> vector<2x16x128xf32>
    %cst_4 = arith.constant 0.0883883461 : f32
    %9 = vector.broadcast %cst_4 : f32 to vector<2x16x128xf32>
    %10 = arith.mulf %8, %9 : vector<2x16x128xf32>
    "tpu.trace_start"() <{level = 10 : i32, message = "hqd,hdk->hqk"}> : () -> ()
    %cst_5 = arith.constant dense<0.000000e+00> : vector<2x16x16xf32>
    %11 = tpu.matmul %10, %6, %cst_5 {dimension_numbers = #tpu.dot_dimension_numbers<[2], [1], [1], [2], [0, 0, 0, 1, 1, 2], [0], [0]>} : vector<2x16x128xf32>, vector<2x128x16xf32>, vector<2x16x16xf32> -> vector<2x16x16xf32>
    "tpu.trace_stop"() : () -> ()
    %cst_6 = arith.constant dense<0xFF800000> : vector<2x16xf32>
    %12 = vector.multi_reduction <maximumf>, %11, %cst_6 [2] : vector<2x16x16xf32> to vector<2x16xf32>
    %13 = vector.shape_cast %12 : vector<2x16xf32> to vector<2x16x1xf32>
    %14 = vector.broadcast %13 : vector<2x16x1xf32> to vector<2x16x16xf32>
    %15 = arith.subf %11, %14 : vector<2x16x16xf32>
    %16 = math.exp %15 : vector<2x16x16xf32>
    %cst_7 = arith.constant dense<0.000000e+00> : vector<2x16xf32>
    %17 = vector.multi_reduction <add>, %16, %cst_7 [2] : vector<2x16x16xf32> to vector<2x16xf32>
    %18 = vector.shape_cast %17 : vector<2x16xf32> to vector<2x16x1xf32>
    %19 = vector.broadcast %18 : vector<2x16x1xf32> to vector<2x16x16xf32>
    %20 = arith.divf %16, %19 : vector<2x16x16xf32>
    "tpu.trace_start"() <{level = 10 : i32, message = "hdk,hqk->hdq"}> : () -> ()
    %cst_8 = arith.constant dense<0.000000e+00> : vector<2x128x16xf32>
    %21 = tpu.matmul %7, %20, %cst_8 {dimension_numbers = #tpu.dot_dimension_numbers<[2], [2], [1], [1], [0, 0, 0, 1, 1, 1], [0], [0]>} : vector<2x128x16xf32>, vector<2x16x16xf32>, vector<2x128x16xf32> -> vector<2x128x16xf32>
    "tpu.trace_stop"() : () -> ()
    %22 = vector.shape_cast %21 : vector<2x128x16xf32> to vector<256x16xf32>
    %c0_9 = arith.constant 0 : index
    %c0_10 = arith.constant 0 : index
    %23 = vector.load %arg3[%c0_9, %c0_10] : memref<256x256xf32, #tpu.memory_space<vmem>>, vector<256x256xf32>
    %cst_11 = arith.constant dense<0.000000e+00> : vector<256x16xf32>
    %24 = tpu.matmul %23, %22, %cst_11 {dimension_numbers = #tpu.dot_dimension_numbers<[1], [0], [0], [1], [0, 0, 1, 1], [], []>} : vector<256x256xf32>, vector<256x16xf32>, vector<256x16xf32> -> vector<256x16xf32>
    %25 = tpu.transpose %24, [1, 0] : vector<256x16xf32> -> vector<16x256xf32>
    %c0_12 = arith.constant 0 : index
    %c0_13 = arith.constant 0 : index
    %26 = vector.load %arg4[%c0_12, %c0_13] : memref<1x256xf32, #tpu.memory_space<vmem>>, vector<1x256xf32>
    %27 = vector.shape_cast %26 : vector<1x256xf32> to vector<256xf32>
    %28 = vector.shape_cast %27 : vector<256xf32> to vector<1x256xf32>
    %29 = vector.broadcast %28 : vector<1x256xf32> to vector<16x256xf32>
    %30 = arith.addf %25, %29 : vector<16x256xf32>
    %c0_14 = arith.constant 0 : index
    %c0_15 = arith.constant 0 : index
    %c0_16 = arith.constant 0 : index
    %31 = vector.load %arg5[%c0_14, %c0_15, %c0_16] : memref<1x16x256xf32, #tpu.memory_space<vmem>>, vector<1x16x256xf32>
    %32 = vector.shape_cast %31 : vector<1x16x256xf32> to vector<16x256xf32>
    %33 = vector.shape_cast %30 : vector<16x256xf32> to vector<1x16x256xf32>
    tpu.vector_store %arg5[%c0_14, %c0_15, %c0_16], %33 {strides = array<i32>} : memref<1x16x256xf32, #tpu.memory_space<vmem>>, vector<1x16x256xf32>,
    return
  }
  func.func @transform_0(%arg0: i32) -> (i32, i32, i32) {
    %c0_i32 = arith.constant 0 : i32
    %c0_i32_0 = arith.constant 0 : i32
    %c0_i32_1 = arith.constant 0 : i32
    return %arg0, %c0_i32, %c0_i32_0 : i32, i32, i32
  }
  func.func @transform_1(%arg0: i32) -> (i32, i32) {
    %c0_i32 = arith.constant 0 : i32
    %c0_i32_0 = arith.constant 0 : i32
    %c0_i32_1 = arith.constant 0 : i32
    return %c0_i32, %c0_i32_0 : i32, i32
  }
  func.func @transform_2(%arg0: i32) -> (i32, i32) {
    %c0_i32 = arith.constant 0 : i32
    %c0_i32_0 = arith.constant 0 : i32
    %c0_i32_1 = arith.constant 0 : i32
    return %c0_i32, %c0_i32_0 : i32, i32
  }
  func.func @transform_3(%arg0: i32) -> (i32, i32) {
    %c0_i32 = arith.constant 0 : i32
    %c0_i32_0 = arith.constant 0 : i32
    %c0_i32_1 = arith.constant 0 : i32
    return %c0_i32, %c0_i32_0 : i32, i32
  }
  func.func @transform_4(%arg0: i32) -> (i32, i32, i32) {
    %c0_i32 = arith.constant 0 : i32
    %c0_i32_0 = arith.constant 0 : i32
    %c0_i32_1 = arith.constant 0 : i32
    return %arg0, %c0_i32, %c0_i32_0 : i32, i32, i32
  }
}

</mosaic_0001>

<llo_original>
// kernel: tpu_custom_call.1
$region0: #{tpu_custom_call.1}
  #allocation0 [shape = 'u32[]', space=smem, size = 0x4, offset = 0x4, fixed_abs, tag = 'smem constant byte address 0x4 - core index']
  #allocation1 [shape = 'u32[72,128]{1,0:T(1,128)}', space=vmem, size = 0x9000, scoped, tag = 'internal scratch']
  %s0 = inlined_call_operand.hbm [shape: f32[2,16,256], index: 0, kind: input, shape index: {}]
  %s1 = inlined_call_operand.hbm [shape: f32[768,256], index: 1, kind: input, shape index: {}]
  %s2 = inlined_call_operand.hbm [shape: f32[256,256], index: 2, kind: input, shape index: {}]
  %s3 = inlined_call_operand.vmem [shape: f32[1,256], index: 3, kind: input, shape index: {}]
  %s4 = inlined_call_operand.hbm [shape: f32[2,16,256], index: 4, kind: output, shape index: {}]
  %s5 = sld [smem:[#allocation0]]
  $region61: #{tpu_custom_call.1} parent=0
    _
  %s7 = ssub.s32 1, %s5
  %s8 = scalar_select 0, %s7, %s5
  $region1: #{tpu_custom_call.1} parent=0
    #allocation2 [shape = 'u8[32768]{0}', space=vmem, size = 0x8000, scoped, tag = 'input window, operand 0']
    #allocation3 [shape = 's32[2]{0}', space=sflag, size = 0x8, scoped, tag = 'scoped memory for tpu_custom_call.1']
    #allocation4 [shape = 's32[2]{0}', space=sflag, size = 0x8, scoped, tag = 'scoped memory for tpu_custom_call.1']
    #allocation5 [shape = 'u8[786432]{0}', space=vmem, size = 0xc0000, scoped, tag = 'input window, operand 1, single buffered']
    #allocation6 [shape = 's32[1]{0}', space=sflag, size = 0x4, scoped, tag = 'scoped memory for tpu_custom_call.1']
    #allocation7 [shape = 'u8[262144]{0}', space=vmem, size = 0x40000, scoped, tag = 'input window, operand 2, single buffered']
    #allocation8 [shape = 'u8[32768]{0}', space=vmem, size = 0x8000, scoped, tag = 'output window, operand 0']
    %9 = vsyncpa [#allocation3], 0
    %s10 = scalar_lea.sflag [#allocation3], 1
    %11 = vsyncpa %s10, 0
    %12 = vsyncpa [#allocation6], 0
    %13 = vsyncpa [#allocation4], 0
    %s14 = scalar_lea.sflag [#allocation4], 1
    %15 = vsyncpa %s14, 0
    loop: start=0, step=1, limit=4
    $region2: #{tpu_custom_call.1} parent=1 // loop_pre_header
      _
    $region3: #{tpu_custom_call.1} parent=1 // loop_header
      %s17 = sphi 0, %s21
      %p18 = scmp.ge.s32.totalorder %s17, 4
      %s27 = sphi 0, %s29
      %s30 = sphi 0, %s27
      %s31 = sphi 0, %s30
      %s47 = sphi 0, %s31
      %s51 = sphi 0, %s51
      %s53 = sphi 0, %s51
      %s54 = sphi 0, %s53
      %s68 = sphi 0, %s54
      %s72 = sphi 0, %s72
      %s74 = sphi 0, %s72
      %s75 = sphi 0, %s74
      %s89 = sphi 0, %s75
      %s93 = sphi 0, %s93
      %s95 = sphi 0, %s93
      %s96 = sphi 0, %s95
      %s110 = sphi 0, %s96
      %s116 = sphi 0, %s118
      %s119 = sphi 0, %s116
      %s120 = sphi 0, %s119
      %s136 = sphi 0, %s120
    $region4: #{tpu_custom_call.1} parent=1 // loop_header_branch
      %20 = sbr.rel (%p18) target = $region8
    $region5: #{tpu_custom_call.1} parent=1 // loop_body
      %s22 = ssub.s32 %s17, 1
      %s23 = ssub.s32 %s17, 2
      %s24 = sadd.s32 %s17, 1
      %s25 = ssub.s32 %s17, %s24
      %p26 = scmp.eq.s32.totalorder %s25, 0
      %s28 = sadd.s32 %s27, 1
      %s29 = scalar_select %p26, %s27, %s28
      %p32 = pneg %p26
      %p33 = scmp.eq.s32.totalorder %s17, 1
      %p34 = por %p32, %p33
      %p35 = scmp.ne.s32.totalorder %s27, %s30
      %p36 = scmp.eq.s32.totalorder %s17, 0
      %p37 = por %p35, %p36
      %p38 = scmp.ne.s32.totalorder %s27, %s30
      %p39 = scmp.eq.s32.totalorder %s22, 1
      %p40 = por %p38, %p39
      %p41 = scmp.ne.s32.totalorder %s30, %s31
      %p42 = scmp.eq.s32.totalorder %s22, 0
      %p43 = por %p41, %p42
      %p44 = scmp.ne.s32.totalorder %s30, %s31
      %p45 = scmp.eq.s32.totalorder %s23, 1
      %p46 = por %p44, %p45
      %p48 = scmp.ne.s32.totalorder %s31, %s47
      %p49 = scmp.eq.s32.totalorder %s23, 0
      %p50 = por %p48, %p49
      %s52 = sadd.s32 %s51, 1
      %p55 = scmp.eq.s32.totalorder %s17, 1
      %p56 = scmp.ne.s32.totalorder %s51, %s53
      %p57 = scmp.eq.s32.totalorder %s17, 0
      %p58 = por %p56, %p57
      %p59 = scmp.ne.s32.totalorder %s51, %s53
      %p60 = scmp.eq.s32.totalorder %s22, 1
      %p61 = por %p59, %p60
      %p62 = scmp.ne.s32.totalorder %s53, %s54
      %p63 = scmp.eq.s32.totalorder %s22, 0
      %p64 = por %p62, %p63
      %p65 = scmp.ne.s32.totalorder %s53, %s54
      %p66 = scmp.eq.s32.totalorder %s23, 1
      %p67 = por %p65, %p66
      %p69 = scmp.ne.s32.totalorder %s54, %s68
      %p70 = scmp.eq.s32.totalorder %s23, 0
      %p71 = por %p69, %p70
      %s73 = sadd.s32 %s72, 1
      %p76 = scmp.eq.s32.totalorder %s17, 1
      %p77 = scmp.ne.s32.totalorder %s72, %s74
      %p78 = scmp.eq.s32.totalorder %s17, 0
      %p79 = por %p77, %p78
      %p80 = scmp.ne.s32.totalorder %s72, %s74
      %p81 = scmp.eq.s32.totalorder %s22, 1
      %p82 = por %p80, %p81
      %p83 = scmp.ne.s32.totalorder %s74, %s75
      %p84 = scmp.eq.s32.totalorder %s22, 0
      %p85 = por %p83, %p84
      %p86 = scmp.ne.s32.totalorder %s74, %s75
      %p87 = scmp.eq.s32.totalorder %s23, 1
      %p88 = por %p86, %p87
      %p90 = scmp.ne.s32.totalorder %s75, %s89
      %p91 = scmp.eq.s32.totalorder %s23, 0
      %p92 = por %p90, %p91
      %s94 = sadd.s32 %s93, 1
      %p97 = scmp.eq.s32.totalorder %s17, 1
      %p98 = scmp.ne.s32.totalorder %s93, %s95
      %p99 = scmp.eq.s32.totalorder %s17, 0
      %p100 = por %p98, %p99
      %p101 = scmp.ne.s32.totalorder %s93, %s95
      %p102 = scmp.eq.s32.totalorder %s22, 1
      %p103 = por %p101, %p102
      %p104 = scmp.ne.s32.totalorder %s95, %s96
      %p105 = scmp.eq.s32.totalorder %s22, 0
      %p106 = por %p104, %p105
      %p107 = scmp.ne.s32.totalorder %s95, %s96
      %p108 = scmp.eq.s32.totalorder %s23, 1
      %p109 = por %p107, %p108
      %p111 = scmp.ne.s32.totalorder %s96, %s110
      %p112 = scmp.eq.s32.totalorder %s23, 0
      %p113 = por %p111, %p112
      %s114 = ssub.s32 %s17, %s24
      %p115 = scmp.eq.s32.totalorder %s114, 0
      %s117 = sadd.s32 %s116, 1
      %s118 = scalar_select %p115, %s116, %s117
      %p121 = pneg %p115
      %p122 = scmp.eq.s32.totalorder %s17, 1
      %p123 = por %p121, %p122
      %p124 = scmp.ne.s32.totalorder %s116, %s119
      %p125 = scmp.eq.s32.totalorder %s17, 0
      %p126 = por %p124, %p125
      %p127 = scmp.ne.s32.totalorder %s116, %s119
      %p128 = scmp.eq.s32.totalorder %s22, 1
      %p129 = por %p127, %p128
      %p130 = scmp.ne.s32.totalorder %s119, %s120
      %p131 = scmp.eq.s32.totalorder %s22, 0
      %p132 = por %p130, %p131
      %p133 = scmp.ne.s32.totalorder %s119, %s120
      %p134 = scmp.eq.s32.totalorder %s23, 1
      %p135 = por %p133, %p134
      %p137 = scmp.ne.s32.totalorder %s120, %s136
      %p138 = scmp.eq.s32.totalorder %s23, 0
      %p139 = por %p137, %p138
      %p140 = scmp.le.s32.totalorder 1, %s17
      %p141 = scmp.lt.s32.totalorder %s17, 3
      %p142 = pnand %p140, %p141
      %p143 = pneg %p142
      // Predicated region
      $region9: #{tpu_custom_call.1} parent=5 // pred_check
        _
      $region10: #{tpu_custom_call.1} parent=5 // pred_check_branch
        %145 = sbr.rel (%p142) target = $region12
      $region11: #{tpu_custom_call.1} parent=5 // pred_region
        %s146 = ssub.s32 %s17, 1
        // Predicated region
        $region13: #{tpu_custom_call.1} parent=11 // pred_check
          %p147 = pneg %p64
        $region14: #{tpu_custom_call.1} parent=11 // pred_check_branch
          %149 = sbr.rel (%p147) target = $region16
        $region15: #{tpu_custom_call.1} parent=11 // pred_region
          %151 = vsyncadd [#allocation6], 0
          %s152 = sshll.u32 %s1, 4
          %s153 = int_to_ptr.hbm [resolvable:$true] %s152
          %s154 = sshll.u32 [#allocation5], 4
          %s155 = int_to_ptr.vmem [resolvable:$true] %s154
          %160 = dma.hbm_to_vmem [thread:$0]  %s153, 24576, %s155, [#allocation6], 256, 256, 16
        $region16: #{tpu_custom_call.1} parent=11 // pred_fallthru
          _
        // Predicated region
        $region17: #{tpu_custom_call.1} parent=11 // pred_check
          %p161 = pneg %p85
        $region18: #{tpu_custom_call.1} parent=11 // pred_check_branch
          %163 = sbr.rel (%p161) target = $region20
        $region19: #{tpu_custom_call.1} parent=11 // pred_region
          %165 = vsyncadd [#allocation6], 0
          %s166 = sshll.u32 %s2, 4
          %s167 = int_to_ptr.hbm [resolvable:$true] %s166
          %s168 = sshll.u32 [#allocation7], 4
          %s169 = int_to_ptr.vmem [resolvable:$true] %s168
          %174 = dma.hbm_to_vmem [thread:$0]  %s167, 8192, %s169, [#allocation6], 256, 256, 16
        $region20: #{tpu_custom_call.1} parent=11 // pred_fallthru
          _
        // Predicated region
        $region21: #{tpu_custom_call.1} parent=11 // pred_check
          %p175 = pneg %p106
        $region22: #{tpu_custom_call.1} parent=11 // pred_check_branch
          %177 = sbr.rel (%p175) target = $region24
        $region23: #{tpu_custom_call.1} parent=11 // pred_region
          _
        $region24: #{tpu_custom_call.1} parent=11 // pred_fallthru
          _
      $region12: #{tpu_custom_call.1} parent=5 // pred_fallthru
        _
      %p178 = scmp.lt.s32.totalorder %s17, 2
      // Predicated region
      $region25: #{tpu_custom_call.1} parent=5 // pred_check
        %p179 = pneg %p178
      $region26: #{tpu_custom_call.1} parent=5 // pred_check_branch
        %181 = sbr.rel (%p179) target = $region28
      $region27: #{tpu_custom_call.1} parent=5 // pred_region
        // Predicated region
        $region29: #{tpu_custom_call.1} parent=27 // pred_check
          %p182 = pneg %p37
        $region30: #{tpu_custom_call.1} parent=27 // pred_check_branch
          %184 = sbr.rel (%p182) target = $region32
        $region31: #{tpu_custom_call.1} parent=27 // pred_region
          %s185 = sand.u32 %s27, 1
          %s186 = scalar_lea.sflag [#allocation3], %s185
          %s187 = sand.u32 %s27, 1
          %s188 = smul.addr %s187, 32
          %s189 = scalar_lea.vmem [#allocation2], %s188
          %191 = vsyncadd %s186, 0
          %s192 = smul.addr %s17, 4
          %s193 = smul.addr %s192, 8
          %s194 = scalar_lea.hbm %s0, %s193
          %s195 = sshll.u32 %s194, 4
          %s196 = int_to_ptr.hbm [resolvable:$true] %s195
          %s197 = sshll.u32 %s189, 4
          %s198 = int_to_ptr.vmem [resolvable:$true] %s197
          %203 = dma.hbm_to_vmem [thread:$0]  %s196, 512, %s198, %s186, 256, 256, 16
        $region32: #{tpu_custom_call.1} parent=27 // pred_fallthru
          _
      $region28: #{tpu_custom_call.1} parent=5 // pred_fallthru
        _
      %p204 = scmp.le.s32.totalorder 1, %s17
      %p205 = scmp.lt.s32.totalorder %s17, 3
      %p206 = pnand %p204, %p205
      %p207 = pneg %p206
      // Predicated region
      $region33: #{tpu_custom_call.1} parent=5 // pred_check
        _
      $region34: #{tpu_custom_call.1} parent=5 // pred_check_branch
        %209 = sbr.rel (%p206) target = $region36
      $region35: #{tpu_custom_call.1} parent=5 // pred_region
        %s210 = ssub.s32 %s17, 1
        %s211 = sand.u32 %s30, 1
        %s212 = scalar_lea.sflag [#allocation3], %s211
        %s213 = sand.u32 %s30, 1
        %s214 = smul.addr %s213, 32
        %s215 = scalar_lea.vmem [#allocation2], %s214
        // Predicated region
        $region37: #{tpu_custom_call.1} parent=35 // pred_check
          %p216 = pneg %p43
        $region38: #{tpu_custom_call.1} parent=35 // pred_check_branch
          %218 = sbr.rel (%p216) target = $region40
        $region39: #{tpu_custom_call.1} parent=35 // pred_region
          %220 = dma.done %s212, 512
        $region40: #{tpu_custom_call.1} parent=35 // pred_fallthru
          _
        // Predicated region
        $region41: #{tpu_custom_call.1} parent=35 // pred_check
          %p221 = pneg %p64
        $region42: #{tpu_custom_call.1} parent=35 // pred_check_branch
          %223 = sbr.rel (%p221) target = $region44
        $region43: #{tpu_custom_call.1} parent=35 // pred_region
          %225 = dma.done [#allocation6], 24576
        $region44: #{tpu_custom_call.1} parent=35 // pred_fallthru
          _
        // Predicated region
        $region45: #{tpu_custom_call.1} parent=35 // pred_check
          %p226 = pneg %p85
        $region46: #{tpu_custom_call.1} parent=35 // pred_check_branch
          %228 = sbr.rel (%p226) target = $region48
        $region47: #{tpu_custom_call.1} parent=35 // pred_region
          %230 = dma.done [#allocation6], 8192
        $region48: #{tpu_custom_call.1} parent=35 // pred_fallthru
          _
        %s231 = sand.u32 %s30, 1
        %s232 = scalar_lea.sflag [#allocation3], %s231
        %s233 = sand.u32 %s30, 1
        %s234 = smul.addr %s233, 32
        %s235 = scalar_lea.vmem [#allocation2], %s234
        %p236 = pneg %p43
        %p237 = pneg %p40
        %p238 = pneg %p64
        %p239 = pneg %p61
        %p240 = pneg %p85
        %p241 = pneg %p82
        %p242 = pneg %p106
        %p243 = pneg %p103
        %p244 = pneg %p132
        %p245 = pneg %p129
        %s246 = sand.u32 %s119, 1
        %s247 = scalar_lea.sflag [#allocation4], %s246
        %s248 = sand.u32 %s119, 1
        %s249 = smul.addr %s248, 32
        %s250 = scalar_lea.vmem [#allocation8], %s249
        %v251 = vld [vmem:[%s215] sm:$0xff]
        %v252 = vld [vmem:[%s215 + $0x8] sm:$0xff]
        %v253 = vld [vmem:[%s215 + $0x10] sm:$0xff]
        %v254 = vld [vmem:[%s215 + $0x18] sm:$0xff]
        %v255 = vld [vmem:[#allocation5] sm:$0xff]
        %v256 = vld [vmem:[#allocation5 + $0x8] sm:$0xff]
        %v257 = vld [vmem:[#allocation5 + $0x10] sm:$0xff]
        %v258 = vld [vmem:[#allocation5 + $0x18] sm:$0xff]
        %v259 = vld [vmem:[#allocation5 + $0x20] sm:$0xff]
        %v260 = vld [vmem:[#allocation5 + $0x28] sm:$0xff]
        %v261 = vld [vmem:[#allocation5 + $0x30] sm:$0xff]
        %v262 = vld [vmem:[#allocation5 + $0x38] sm:$0xff]
        %v263 = vld [vmem:[#allocation5 + $0x40] sm:$0xff]
        %v264 = vld [vmem:[#allocation5 + $0x48] sm:$0xff]
        %v265 = vld [vmem:[#allocation5 + $0x50] sm:$0xff]
        %v266 = vld [vmem:[#allocation5 + $0x58] sm:$0xff]
        %v267 = vld [vmem:[#allocation5 + $0x60] sm:$0xff]
        %v268 = vld [vmem:[#allocation5 + $0x68] sm:$0xff]
        %v269 = vld [vmem:[#allocation5 + $0x70] sm:$0xff]
        %v270 = vld [vmem:[#allocation5 + $0x78] sm:$0xff]
        %v271 = vld [vmem:[#allocation5 + $0x80] sm:$0xff]
        %v272 = vld [vmem:[#allocation5 + $0x88] sm:$0xff]
        %v273 = vld [vmem:[#allocation5 + $0x90] sm:$0xff]
        %v274 = vld [vmem:[#allocation5 + $0x98] sm:$0xff]
        %v275 = vld [vmem:[#allocation5 + $0xa0] sm:$0xff]
        %v276 = vld [vmem:[#allocation5 + $0xa8] sm:$0xff]
        %v277 = vld [vmem:[#allocation5 + $0xb0] sm:$0xff]
        %v278 = vld [vmem:[#allocation5 + $0xb8] sm:$0xff]
        %v279 = vld [vmem:[#allocation5 + $0xc0] sm:$0xff]
        %v280 = vld [vmem:[#allocation5 + $0xc8] sm:$0xff]
        %v281 = vld [vmem:[#allocation5 + $0xd0] sm:$0xff]
        %v282 = vld [vmem:[#allocation5 + $0xd8] sm:$0xff]
        %v283 = vld [vmem:[#allocation5 + $0xe0] sm:$0xff]
        %v284 = vld [vmem:[#allocation5 + $0xe8] sm:$0xff]
        %v285 = vld [vmem:[#allocation5 + $0xf0] sm:$0xff]
        %v286 = vld [vmem:[#allocation5 + $0xf8] sm:$0xff]
        %v287 = vld [vmem:[#allocation5 + $0x100] sm:$0xff]
        %v288 = vld [vmem:[#allocation5 + $0x108] sm:$0xff]
        %v289 = vld [vmem:[#allocation5 + $0x110] sm:$0xff]
        %v290 = vld [vmem:[#allocation5 + $0x118] sm:$0xff]
        %v291 = vld [vmem:[#allocation5 + $0x120] sm:$0xff]
        %v292 = vld [vmem:[#allocation5 + $0x128] sm:$0xff]
        %v293 = vld [vmem:[#allocation5 + $0x130] sm:$0xff]
        %v294 = vld [vmem:[#allocation5 + $0x138] sm:$0xff]
        %v295 = vld [vmem:[#allocation5 + $0x140] sm:$0xff]
        %v296 = vld [vmem:[#allocation5 + $0x148] sm:$0xff]
        %v297 = vld [vmem:[#allocation5 + $0x150] sm:$0xff]
        %v298 = vld [vmem:[#allocation5 + $0x158] sm:$0xff]
        %v299 = vld [vmem:[#allocation5 + $0x160] sm:$0xff]
        %v300 = vld [vmem:[#allocation5 + $0x168] sm:$0xff]
        %v301 = vld [vmem:[#allocation5 + $0x170] sm:$0xff]
        %v302 = vld [vmem:[#allocation5 + $0x178] sm:$0xff]
        %v303 = vld [vmem:[#allocation5 + $0x180] sm:$0xff]
        %v304 = vld [vmem:[#allocation5 + $0x188] sm:$0xff]
        %v305 = vld [vmem:[#allocation5 + $0x190] sm:$0xff]
        %v306 = vld [vmem:[#allocation5 + $0x198] sm:$0xff]
        %v307 = vld [vmem:[#allocation5 + $0x1a0] sm:$0xff]
        %v308 = vld [vmem:[#allocation5 + $0x1a8] sm:$0xff]
        %v309 = vld [vmem:[#allocation5 + $0x1b0] sm:$0xff]
        %v310 = vld [vmem:[#allocation5 + $0x1b8] sm:$0xff]
        %v311 = vld [vmem:[#allocation5 + $0x1c0] sm:$0xff]
        %v312 = vld [vmem:[#allocation5 + $0x1c8] sm:$0xff]
        %v313 = vld [vmem:[#allocation5 + $0x1d0] sm:$0xff]
        %v314 = vld [vmem:[#allocation5 + $0x1d8] sm:$0xff]
        %v315 = vld [vmem:[#allocation5 + $0x1e0] sm:$0xff]
        %v316 = vld [vmem:[#allocation5 + $0x1e8] sm:$0xff]
        %v317 = vld [vmem:[#allocation5 + $0x1f0] sm:$0xff]
        %v318 = vld [vmem:[#allocation5 + $0x1f8] sm:$0xff]
        %v319 = vld [vmem:[#allocation5 + $0x200] sm:$0xff]
        %v320 = vld [vmem:[#allocation5 + $0x208] sm:$0xff]
        %v321 = vld [vmem:[#allocation5 + $0x210] sm:$0xff]
        %v322 = vld [vmem:[#allocation5 + $0x218] sm:$0xff]
        %v323 = vld [vmem:[#allocation5 + $0x220] sm:$0xff]
        %v324 = vld [vmem:[#allocation5 + $0x228] sm:$0xff]
        %v325 = vld [vmem:[#allocation5 + $0x230] sm:$0xff]
        %v326 = vld [vmem:[#allocation5 + $0x238] sm:$0xff]
        %v327 = vld [vmem:[#allocation5 + $0x240] sm:$0xff]
        %v328 = vld [vmem:[#allocation5 + $0x248] sm:$0xff]
        %v329 = vld [vmem:[#allocation5 + $0x250] sm:$0xff]
        %v330 = vld [vmem:[#allocation5 + $0x258] sm:$0xff]
        %v331 = vld [vmem:[#allocation5 + $0x260] sm:$0xff]
        %v332 = vld [vmem:[#allocation5 + $0x268] sm:$0xff]
        %v333 = vld [vmem:[#allocation5 + $0x270] sm:$0xff]
        %v334 = vld [vmem:[#allocation5 + $0x278] sm:$0xff]
        %v335 = vld [vmem:[#allocation5 + $0x280] sm:$0xff]
        %v336 = vld [vmem:[#allocation5 + $0x288] sm:$0xff]
        %v337 = vld [vmem:[#allocation5 + $0x290] sm:$0xff]
        %v338 = vld [vmem:[#allocation5 + $0x298] sm:$0xff]
        %v339 = vld [vmem:[#allocation5 + $0x2a0] sm:$0xff]
        %v340 = vld [vmem:[#allocation5 + $0x2a8] sm:$0xff]
        %v341 = vld [vmem:[#allocation5 + $0x2b0] sm:$0xff]
        %v342 = vld [vmem:[#allocation5 + $0x2b8] sm:$0xff]
        %v343 = vld [vmem:[#allocation5 + $0x2c0] sm:$0xff]
        %v344 = vld [vmem:[#allocation5 + $0x2c8] sm:$0xff]
        %v345 = vld [vmem:[#allocation5 + $0x2d0] sm:$0xff]
        %v346 = vld [vmem:[#allocation5 + $0x2d8] sm:$0xff]
        %v347 = vld [vmem:[#allocation5 + $0x2e0] sm:$0xff]
        %v348 = vld [vmem:[#allocation5 + $0x2e8] sm:$0xff]
        %v349 = vld [vmem:[#allocation5 + $0x2f0] sm:$0xff]
        %v350 = vld [vmem:[#allocation5 + $0x2f8] sm:$0xff]
        %v351 = vld [vmem:[#allocation5 + $0x300] sm:$0xff]
        %v352 = vld [vmem:[#allocation5 + $0x308] sm:$0xff]
        %v353 = vld [vmem:[#allocation5 + $0x310] sm:$0xff]
        %v354 = vld [vmem:[#allocation5 + $0x318] sm:$0xff]
        %v355 = vld [vmem:[#allocation5 + $0x320] sm:$0xff]
        %v356 = vld [vmem:[#allocation5 + $0x328] sm:$0xff]
        %v357 = vld [vmem:[#allocation5 + $0x330] sm:$0xff]
        %v358 = vld [vmem:[#allocation5 + $0x338] sm:$0xff]
        %v359 = vld [vmem:[#allocation5 + $0x340] sm:$0xff]
        %v360 = vld [vmem:[#allocation5 + $0x348] sm:$0xff]
        %v361 = vld [vmem:[#allocation5 + $0x350] sm:$0xff]
        %v362 = vld [vmem:[#allocation5 + $0x358] sm:$0xff]
        %v363 = vld [vmem:[#allocation5 + $0x360] sm:$0xff]
        %v364 = vld [vmem:[#allocation5 + $0x368] sm:$0xff]
        %v365 = vld [vmem:[#allocation5 + $0x370] sm:$0xff]
        %v366 = vld [vmem:[#allocation5 + $0x378] sm:$0xff]
        %v367 = vld [vmem:[#allocation5 + $0x380] sm:$0xff]
        %v368 = vld [vmem:[#allocation5 + $0x388] sm:$0xff]
        %v369 = vld [vmem:[#allocation5 + $0x390] sm:$0xff]
        %v370 = vld [vmem:[#allocation5 + $0x398] sm:$0xff]
        %v371 = vld [vmem:[#allocation5 + $0x3a0] sm:$0xff]
        %v372 = vld [vmem:[#allocation5 + $0x3a8] sm:$0xff]
        %v373 = vld [vmem:[#allocation5 + $0x3b0] sm:$0xff]
        %v374 = vld [vmem:[#allocation5 + $0x3b8] sm:$0xff]
        %v375 = vld [vmem:[#allocation5 + $0x3c0] sm:$0xff]
        %v376 = vld [vmem:[#allocation5 + $0x3c8] sm:$0xff]
        %v377 = vld [vmem:[#allocation5 + $0x3d0] sm:$0xff]
        %v378 = vld [vmem:[#allocation5 + $0x3d8] sm:$0xff]
        %v379 = vld [vmem:[#allocation5 + $0x3e0] sm:$0xff]
        %v380 = vld [vmem:[#allocation5 + $0x3e8] sm:$0xff]
        %v381 = vld [vmem:[#allocation5 + $0x3f0] sm:$0xff]
        %v382 = vld [vmem:[#allocation5 + $0x3f8] sm:$0xff]
        %v383 = vld [vmem:[#allocation5 + $0x400] sm:$0xff]
        %v384 = vld [vmem:[#allocation5 + $0x408] sm:$0xff]
        %v385 = vld [vmem:[#allocation5 + $0x410] sm:$0xff]
        %v386 = vld [vmem:[#allocation5 + $0x418] sm:$0xff]
        %v387 = vld [vmem:[#allocation5 + $0x420] sm:$0xff]
        %v388 = vld [vmem:[#allocation5 + $0x428] sm:$0xff]
        %v389 = vld [vmem:[#allocation5 + $0x430] sm:$0xff]
        %v390 = vld [vmem:[#allocation5 + $0x438] sm:$0xff]
        %v391 = vld [vmem:[#allocation5 + $0x440] sm:$0xff]
        %v392 = vld [vmem:[#allocation5 + $0x448] sm:$0xff]
        %v393 = vld [vmem:[#allocation5 + $0x450] sm:$0xff]
        %v394 = vld [vmem:[#allocation5 + $0x458] sm:$0xff]
        %v395 = vld [vmem:[#allocation5 + $0x460] sm:$0xff]
        %v396 = vld [vmem:[#allocation5 + $0x468] sm:$0xff]
        %v397 = vld [vmem:[#allocation5 + $0x470] sm:$0xff]
        %v398 = vld [vmem:[#allocation5 + $0x478] sm:$0xff]
        %v399 = vld [vmem:[#allocation5 + $0x480] sm:$0xff]
        %v400 = vld [vmem:[#allocation5 + $0x488] sm:$0xff]
        %v401 = vld [vmem:[#allocation5 + $0x490] sm:$0xff]
        %v402 = vld [vmem:[#allocation5 + $0x498] sm:$0xff]
        %v403 = vld [vmem:[#allocation5 + $0x4a0] sm:$0xff]
        %v404 = vld [vmem:[#allocation5 + $0x4a8] sm:$0xff]
        %v405 = vld [vmem:[#allocation5 + $0x4b0] sm:$0xff]
        %v406 = vld [vmem:[#allocation5 + $0x4b8] sm:$0xff]
        %v407 = vld [vmem:[#allocation5 + $0x4c0] sm:$0xff]
        %v408 = vld [vmem:[#allocation5 + $0x4c8] sm:$0xff]
        %v409 = vld [vmem:[#allocation5 + $0x4d0] sm:$0xff]
        %v410 = vld [vmem:[#allocation5 + $0x4d8] sm:$0xff]
        %v411 = vld [vmem:[#allocation5 + $0x4e0] sm:$0xff]
        %v412 = vld [vmem:[#allocation5 + $0x4e8] sm:$0xff]
        %v413 = vld [vmem:[#allocation5 + $0x4f0] sm:$0xff]
        %v414 = vld [vmem:[#allocation5 + $0x4f8] sm:$0xff]
        %v415 = vld [vmem:[#allocation5 + $0x500] sm:$0xff]
        %v416 = vld [vmem:[#allocation5 + $0x508] sm:$0xff]
        %v417 = vld [vmem:[#allocation5 + $0x510] sm:$0xff]
        %v418 = vld [vmem:[#allocation5 + $0x518] sm:$0xff]
        %v419 = vld [vmem:[#allocation5 + $0x520] sm:$0xff]
        %v420 = vld [vmem:[#allocation5 + $0x528] sm:$0xff]
        %v421 = vld [vmem:[#allocation5 + $0x530] sm:$0xff]
        %v422 = vld [vmem:[#allocation5 + $0x538] sm:$0xff]
        %v423 = vld [vmem:[#allocation5 + $0x540] sm:$0xff]
        %v424 = vld [vmem:[#allocation5 + $0x548] sm:$0xff]
        %v425 = vld [vmem:[#allocation5 + $0x550] sm:$0xff]
        %v426 = vld [vmem:[#allocation5 + $0x558] sm:$0xff]
        %v427 = vld [vmem:[#allocation5 + $0x560] sm:$0xff]
        %v428 = vld [vmem:[#allocation5 + $0x568] sm:$0xff]
        %v429 = vld [vmem:[#allocation5 + $0x570] sm:$0xff]
        %v430 = vld [vmem:[#allocation5 + $0x578] sm:$0xff]
        %v431 = vld [vmem:[#allocation5 + $0x580] sm:$0xff]
        %v432 = vld [vmem:[#allocation5 + $0x588] sm:$0xff]
        %v433 = vld [vmem:[#allocation5 + $0x590] sm:$0xff]
        %v434 = vld [vmem:[#allocation5 + $0x598] sm:$0xff]
        %v435 = vld [vmem:[#allocation5 + $0x5a0] sm:$0xff]
        %v436 = vld [vmem:[#allocation5 + $0x5a8] sm:$0xff]
        %v437 = vld [vmem:[#allocation5 + $0x5b0] sm:$0xff]
        %v438 = vld [vmem:[#allocation5 + $0x5b8] sm:$0xff]
        %v439 = vld [vmem:[#allocation5 + $0x5c0] sm:$0xff]
        %v440 = vld [vmem:[#allocation5 + $0x5c8] sm:$0xff]
        %v441 = vld [vmem:[#allocation5 + $0x5d0] sm:$0xff]
        %v442 = vld [vmem:[#allocation5 + $0x5d8] sm:$0xff]
        %v443 = vld [vmem:[#allocation5 + $0x5e0] sm:$0xff]
        %v444 = vld [vmem:[#allocation5 + $0x5e8] sm:$0xff]
        %v445 = vld [vmem:[#allocation5 + $0x5f0] sm:$0xff]
        %v446 = vld [vmem:[#allocation5 + $0x5f8] sm:$0xff]
        %447 = vmatpush.xpose.msra.mxu0 0.0
        %448 = vmatpush.xpose.msra.mxu0 0.0
        %449 = vmatpush.xpose.msra.mxu0 0.0
        %450 = vmatpush.xpose.msra.mxu0 0.0
        %451 = vmatpush.xpose.msra.mxu0 0.0
        %452 = vmatpush.xpose.msra.mxu0 0.0
        %453 = vmatpush.xpose.msra.mxu0 0.0
        %454 = vmatpush.xpose.msra.mxu0 0.0
        %455 = vmatpush.xpose.msra.mxu0 0.0
        %456 = vmatpush.xpose.msra.mxu0 0.0
        %457 = vmatpush.xpose.msra.mxu0 0.0
        %458 = vmatpush.xpose.msra.mxu0 0.0
        %459 = vmatpush.xpose.msra.mxu0 0.0
        %460 = vmatpush.xpose.msra.mxu0 0.0
        %461 = vmatpush.xpose.msra.mxu0 %v253
        %462 = vmatpush.xpose.msra.mxu0 %v251
        %463 = vmatmul.f32.gmra.mxu0 %v255
        %v464 = vpop.f32.mrf.mxu0
        %v465 = vadd.f32 0.0, %v464
        %466 = vmatmul.f32.gmra.mxu0 %v257
        %v467 = vpop.f32.mrf.mxu0
        %v468 = vadd.f32 0.0, %v467
        %469 = vmatmul.f32.gmra.mxu0 %v259
        %v470 = vpop.f32.mrf.mxu0
        %v471 = vadd.f32 0.0, %v470
        %472 = vmatmul.f32.gmra.mxu0 %v261
        %v473 = vpop.f32.mrf.mxu0
        %v474 = vadd.f32 0.0, %v473
        %475 = vmatmul.f32.gmra.mxu0 %v263
        %v476 = vpop.f32.mrf.mxu0
        %v477 = vadd.f32 0.0, %v476
        %478 = vmatmul.f32.gmra.mxu0 %v265
        %v479 = vpop.f32.mrf.mxu0
        %v480 = vadd.f32 0.0, %v479
        %481 = vmatmul.f32.gmra.mxu0 %v267
        %v482 = vpop.f32.mrf.mxu0
        %v483 = vadd.f32 0.0, %v482
        %484 = vmatmul.f32.gmra.mxu0 %v269
        %v485 = vpop.f32.mrf.mxu0
        %v486 = vadd.f32 0.0, %v485
        %487 = vmatmul.f32.gmra.mxu0 %v271
        %v488 = vpop.f32.mrf.mxu0
        %v489 = vadd.f32 0.0, %v488
        %490 = vmatmul.f32.gmra.mxu0 %v273
        %v491 = vpop.f32.mrf.mxu0
        %v492 = vadd.f32 0.0, %v491
        %493 = vmatmul.f32.gmra.mxu0 %v275
        %v494 = vpop.f32.mrf.mxu0
        %v495 = vadd.f32 0.0, %v494
        %496 = vmatmul.f32.gmra.mxu0 %v277
        %v497 = vpop.f32.mrf.mxu0
        %v498 = vadd.f32 0.0, %v497
        %499 = vmatmul.f32.gmra.mxu0 %v279
        %v500 = vpop.f32.mrf.mxu0
        %v501 = vadd.f32 0.0, %v500
        %502 = vmatmul.f32.gmra.mxu0 %v281
        %v503 = vpop.f32.mrf.mxu0
        %v504 = vadd.f32 0.0, %v503
        %505 = vmatmul.f32.gmra.mxu0 %v283
        %v506 = vpop.f32.mrf.mxu0
        %v507 = vadd.f32 0.0, %v506
        %508 = vmatmul.f32.gmra.mxu0 %v285
        %v509 = vpop.f32.mrf.mxu0
        %v510 = vadd.f32 0.0, %v509
        %511 = vmatmul.f32.gmra.mxu0 %v287
        %v512 = vpop.f32.mrf.mxu0
        %v513 = vadd.f32 0.0, %v512
        %514 = vmatmul.f32.gmra.mxu0 %v289
        %v515 = vpop.f32.mrf.mxu0
        %v516 = vadd.f32 0.0, %v515
        %517 = vmatmul.f32.gmra.mxu0 %v291
        %v518 = vpop.f32.mrf.mxu0
        %v519 = vadd.f32 0.0, %v518
        %520 = vmatmul.f32.gmra.mxu0 %v293
        %v521 = vpop.f32.mrf.mxu0
        %v522 = vadd.f32 0.0, %v521
        %523 = vmatmul.f32.gmra.mxu0 %v295
        %v524 = vpop.f32.mrf.mxu0
        %v525 = vadd.f32 0.0, %v524
        %526 = vmatmul.f32.gmra.mxu0 %v297
        %v527 = vpop.f32.mrf.mxu0
        %v528 = vadd.f32 0.0, %v527
        %529 = vmatmul.f32.gmra.mxu0 %v299
        %v530 = vpop.f32.mrf.mxu0
        %v531 = vadd.f32 0.0, %v530
        %532 = vmatmul.f32.gmra.mxu0 %v301
        %v533 = vpop.f32.mrf.mxu0
        %v534 = vadd.f32 0.0, %v533
        %535 = vmatmul.f32.gmra.mxu0 %v303
        %v536 = vpop.f32.mrf.mxu0
        %v537 = vadd.f32 0.0, %v536
        %538 = vmatmul.f32.gmra.mxu0 %v305
        %v539 = vpop.f32.mrf.mxu0
        %v540 = vadd.f32 0.0, %v539
        %541 = vmatmul.f32.gmra.mxu0 %v307
        %v542 = vpop.f32.mrf.mxu0
        %v543 = vadd.f32 0.0, %v542
        %544 = vmatmul.f32.gmra.mxu0 %v309
        %v545 = vpop.f32.mrf.mxu0
        %v546 = vadd.f32 0.0, %v545
        %547 = vmatmul.f32.gmra.mxu0 %v311
        %v548 = vpop.f32.mrf.mxu0
        %v549 = vadd.f32 0.0, %v548
        %550 = vmatmul.f32.gmra.mxu0 %v313
        %v551 = vpop.f32.mrf.mxu0
        %v552 = vadd.f32 0.0, %v551
        %553 = vmatmul.f32.gmra.mxu0 %v315
        %v554 = vpop.f32.mrf.mxu0
        %v555 = vadd.f32 0.0, %v554
        %556 = vmatmul.f32.gmra.mxu0 %v317
        %v557 = vpop.f32.mrf.mxu0
        %v558 = vadd.f32 0.0, %v557
        %559 = vmatmul.f32.gmra.mxu0 %v319
        %v560 = vpop.f32.mrf.mxu0
        %v561 = vadd.f32 0.0, %v560
        %562 = vmatmul.f32.gmra.mxu0 %v321
        %v563 = vpop.f32.mrf.mxu0
        %v564 = vadd.f32 0.0, %v563
        %565 = vmatmul.f32.gmra.mxu0 %v323
        %v566 = vpop.f32.mrf.mxu0
        %v567 = vadd.f32 0.0, %v566
        %568 = vmatmul.f32.gmra.mxu0 %v325
        %v569 = vpop.f32.mrf.mxu0
        %v570 = vadd.f32 0.0, %v569
        %571 = vmatmul.f32.gmra.mxu0 %v327
        %v572 = vpop.f32.mrf.mxu0
        %v573 = vadd.f32 0.0, %v572
        %574 = vmatmul.f32.gmra.mxu0 %v329
        %v575 = vpop.f32.mrf.mxu0
        %v576 = vadd.f32 0.0, %v575
        %577 = vmatmul.f32.gmra.mxu0 %v331
        %v578 = vpop.f32.mrf.mxu0
        %v579 = vadd.f32 0.0, %v578
        %580 = vmatmul.f32.gmra.mxu0 %v333
        %v581 = vpop.f32.mrf.mxu0
        %v582 = vadd.f32 0.0, %v581
        %583 = vmatmul.f32.gmra.mxu0 %v335
        %v584 = vpop.f32.mrf.mxu0
        %v585 = vadd.f32 0.0, %v584
        %586 = vmatmul.f32.gmra.mxu0 %v337
        %v587 = vpop.f32.mrf.mxu0
        %v588 = vadd.f32 0.0, %v587
        %589 = vmatmul.f32.gmra.mxu0 %v339
        %v590 = vpop.f32.mrf.mxu0
        %v591 = vadd.f32 0.0, %v590
        %592 = vmatmul.f32.gmra.mxu0 %v341
        %v593 = vpop.f32.mrf.mxu0
        %v594 = vadd.f32 0.0, %v593
        %595 = vmatmul.f32.gmra.mxu0 %v343
        %v596 = vpop.f32.mrf.mxu0
        %v597 = vadd.f32 0.0, %v596
        %598 = vmatmul.f32.gmra.mxu0 %v345
        %v599 = vpop.f32.mrf.mxu0
        %v600 = vadd.f32 0.0, %v599
        %601 = vmatmul.f32.gmra.mxu0 %v347
        %v602 = vpop.f32.mrf.mxu0
        %v603 = vadd.f32 0.0, %v602
        %604 = vmatmul.f32.gmra.mxu0 %v349
        %v605 = vpop.f32.mrf.mxu0
        %v606 = vadd.f32 0.0, %v605
        %607 = vmatmul.f32.gmra.mxu0 %v351
        %v608 = vpop.f32.mrf.mxu0
        %v609 = vadd.f32 0.0, %v608
        %610 = vmatmul.f32.gmra.mxu0 %v353
        %v611 = vpop.f32.mrf.mxu0
        %v612 = vadd.f32 0.0, %v611
        %613 = vmatmul.f32.gmra.mxu0 %v355
        %v614 = vpop.f32.mrf.mxu0
        %v615 = vadd.f32 0.0, %v614
        %616 = vmatmul.f32.gmra.mxu0 %v357
        %v617 = vpop.f32.mrf.mxu0
        %v618 = vadd.f32 0.0, %v617
        %619 = vmatmul.f32.gmra.mxu0 %v359
        %v620 = vpop.f32.mrf.mxu0
        %v621 = vadd.f32 0.0, %v620
        %622 = vmatmul.f32.gmra.mxu0 %v361
        %v623 = vpop.f32.mrf.mxu0
        %v624 = vadd.f32 0.0, %v623
        %625 = vmatmul.f32.gmra.mxu0 %v363
        %v626 = vpop.f32.mrf.mxu0
        %v627 = vadd.f32 0.0, %v626
        %628 = vmatmul.f32.gmra.mxu0 %v365
        %v629 = vpop.f32.mrf.mxu0
        %v630 = vadd.f32 0.0, %v629
        %631 = vmatmul.f32.gmra.mxu0 %v367
        %v632 = vpop.f32.mrf.mxu0
        %v633 = vadd.f32 0.0, %v632
        %634 = vmatmul.f32.gmra.mxu0 %v369
        %v635 = vpop.f32.mrf.mxu0
        %v636 = vadd.f32 0.0, %v635
        %637 = vmatmul.f32.gmra.mxu0 %v371
        %v638 = vpop.f32.mrf.mxu0
        %v639 = vadd.f32 0.0, %v638
        %640 = vmatmul.f32.gmra.mxu0 %v373
        %v641 = vpop.f32.mrf.mxu0
        %v642 = vadd.f32 0.0, %v641
        %643 = vmatmul.f32.gmra.mxu0 %v375
        %v644 = vpop.f32.mrf.mxu0
        %v645 = vadd.f32 0.0, %v644
        %646 = vmatmul.f32.gmra.mxu0 %v377
        %v647 = vpop.f32.mrf.mxu0
        %v648 = vadd.f32 0.0, %v647
        %649 = vmatmul.f32.gmra.mxu0 %v379
        %v650 = vpop.f32.mrf.mxu0
        %v651 = vadd.f32 0.0, %v650
        %652 = vmatmul.f32.gmra.mxu0 %v381
        %v653 = vpop.f32.mrf.mxu0
        %v654 = vadd.f32 0.0, %v653
        %655 = vmatmul.f32.gmra.mxu0 %v383
        %v656 = vpop.f32.mrf.mxu0
        %v657 = vadd.f32 0.0, %v656
        %658 = vmatmul.f32.gmra.mxu0 %v385
        %v659 = vpop.f32.mrf.mxu0
        %v660 = vadd.f32 0.0, %v659
        %661 = vmatmul.f32.gmra.mxu0 %v387
        %v662 = vpop.f32.mrf.mxu0
        %v663 = vadd.f32 0.0, %v662
        %664 = vmatmul.f32.gmra.mxu0 %v389
        %v665 = vpop.f32.mrf.mxu0
        %v666 = vadd.f32 0.0, %v665
        %667 = vmatmul.f32.gmra.mxu0 %v391
        %v668 = vpop.f32.mrf.mxu0
        %v669 = vadd.f32 0.0, %v668
        %670 = vmatmul.f32.gmra.mxu0 %v393
        %v671 = vpop.f32.mrf.mxu0
        %v672 = vadd.f32 0.0, %v671
        %673 = vmatmul.f32.gmra.mxu0 %v395
        %v674 = vpop.f32.mrf.mxu0
        %v675 = vadd.f32 0.0, %v674
        %676 = vmatmul.f32.gmra.mxu0 %v397
        %v677 = vpop.f32.mrf.mxu0
        %v678 = vadd.f32 0.0, %v677
        %679 = vmatmul.f32.gmra.mxu0 %v399
        %v680 = vpop.f32.mrf.mxu0
        %v681 = vadd.f32 0.0, %v680
        %682 = vmatmul.f32.gmra.mxu0 %v401
        %v683 = vpop.f32.mrf.mxu0
        %v684 = vadd.f32 0.0, %v683
        %685 = vmatmul.f32.gmra.mxu0 %v403
        %v686 = vpop.f32.mrf.mxu0
        %v687 = vadd.f32 0.0, %v686
        %688 = vmatmul.f32.gmra.mxu0 %v405
        %v689 = vpop.f32.mrf.mxu0
        %v690 = vadd.f32 0.0, %v689
        %691 = vmatmul.f32.gmra.mxu0 %v407
        %v692 = vpop.f32.mrf.mxu0
        %v693 = vadd.f32 0.0, %v692
        %694 = vmatmul.f32.gmra.mxu0 %v409
        %v695 = vpop.f32.mrf.mxu0
        %v696 = vadd.f32 0.0, %v695
        %697 = vmatmul.f32.gmra.mxu0 %v411
        %v698 = vpop.f32.mrf.mxu0
        %v699 = vadd.f32 0.0, %v698
        %700 = vmatmul.f32.gmra.mxu0 %v413
        %v701 = vpop.f32.mrf.mxu0
        %v702 = vadd.f32 0.0, %v701
        %703 = vmatmul.f32.gmra.mxu0 %v415
        %v704 = vpop.f32.mrf.mxu0
        %v705 = vadd.f32 0.0, %v704
        %706 = vmatmul.f32.gmra.mxu0 %v417
        %v707 = vpop.f32.mrf.mxu0
        %v708 = vadd.f32 0.0, %v707
        %709 = vmatmul.f32.gmra.mxu0 %v419
        %v710 = vpop.f32.mrf.mxu0
        %v711 = vadd.f32 0.0, %v710
        %712 = vmatmul.f32.gmra.mxu0 %v421
        %v713 = vpop.f32.mrf.mxu0
        %v714 = vadd.f32 0.0, %v713
        %715 = vmatmul.f32.gmra.mxu0 %v423
        %v716 = vpop.f32.mrf.mxu0
        %v717 = vadd.f32 0.0, %v716
        %718 = vmatmul.f32.gmra.mxu0 %v425
        %v719 = vpop.f32.mrf.mxu0
        %v720 = vadd.f32 0.0, %v719
        %721 = vmatmul.f32.gmra.mxu0 %v427
        %v722 = vpop.f32.mrf.mxu0
        %v723 = vadd.f32 0.0, %v722
        %724 = vmatmul.f32.gmra.mxu0 %v429
        %v725 = vpop.f32.mrf.mxu0
        %v726 = vadd.f32 0.0, %v725
        %727 = vmatmul.f32.gmra.mxu0 %v431
        %v728 = vpop.f32.mrf.mxu0
        %v729 = vadd.f32 0.0, %v728
        %730 = vmatmul.f32.gmra.mxu0 %v433
        %v731 = vpop.f32.mrf.mxu0
        %v732 = vadd.f32 0.0, %v731
        %733 = vmatmul.f32.gmra.mxu0 %v435
        %v734 = vpop.f32.mrf.mxu0
        %v735 = vadd.f32 0.0, %v734
        %736 = vmatmul.f32.gmra.mxu0 %v437
        %v737 = vpop.f32.mrf.mxu0
        %v738 = vadd.f32 0.0, %v737
        %739 = vmatmul.f32.gmra.mxu0 %v439
        %v740 = vpop.f32.mrf.mxu0
        %v741 = vadd.f32 0.0, %v740
        %742 = vmatmul.f32.gmra.mxu0 %v441
        %v743 = vpop.f32.mrf.mxu0
        %v744 = vadd.f32 0.0, %v743
        %745 = vmatmul.f32.gmra.mxu0 %v443
        %v746 = vpop.f32.mrf.mxu0
        %v747 = vadd.f32 0.0, %v746
        %748 = vmatmul.f32.gmra.mxu0 %v445
        %v749 = vpop.f32.mrf.mxu0
        %v750 = vadd.f32 0.0, %v749
        %751 = vdwg.mxu0
        %752 = vmatpush.xpose.msra.mxu0 0.0
        %753 = vmatpush.xpose.msra.mxu0 0.0
        %754 = vmatpush.xpose.msra.mxu0 0.0
        %755 = vmatpush.xpose.msra.mxu0 0.0
        %756 = vmatpush.xpose.msra.mxu0 0.0
        %757 = vmatpush.xpose.msra.mxu0 0.0
        %758 = vmatpush.xpose.msra.mxu0 0.0
        %759 = vmatpush.xpose.msra.mxu0 0.0
        %760 = vmatpush.xpose.msra.mxu0 0.0
        %761 = vmatpush.xpose.msra.mxu0 0.0
        %762 = vmatpush.xpose.msra.mxu0 0.0
        %763 = vmatpush.xpose.msra.mxu0 0.0
        %764 = vmatpush.xpose.msra.mxu0 0.0
        %765 = vmatpush.xpose.msra.mxu0 0.0
        %766 = vmatpush.xpose.msra.mxu0 %v254
        %767 = vmatpush.xpose.msra.mxu0 %v252
        %768 = vmatmul.f32.gmra.mxu0 %v256
        %v769 = vpop.f32.mrf.mxu0
        %v770 = vadd.f32 %v465, %v769
        %771 = vmatmul.f32.gmra.mxu0 %v258
        %v772 = vpop.f32.mrf.mxu0
        %v773 = vadd.f32 %v468, %v772
        %774 = vmatmul.f32.gmra.mxu0 %v260
        %v775 = vpop.f32.mrf.mxu0
        %v776 = vadd.f32 %v471, %v775
        %777 = vmatmul.f32.gmra.mxu0 %v262
        %v778 = vpop.f32.mrf.mxu0
        %v779 = vadd.f32 %v474, %v778
        %780 = vmatmul.f32.gmra.mxu0 %v264
        %v781 = vpop.f32.mrf.mxu0
        %v782 = vadd.f32 %v477, %v781
        %783 = vmatmul.f32.gmra.mxu0 %v266
        %v784 = vpop.f32.mrf.mxu0
        %v785 = vadd.f32 %v480, %v784
        %786 = vmatmul.f32.gmra.mxu0 %v268
        %v787 = vpop.f32.mrf.mxu0
        %v788 = vadd.f32 %v483, %v787
        %789 = vmatmul.f32.gmra.mxu0 %v270
        %v790 = vpop.f32.mrf.mxu0
        %v791 = vadd.f32 %v486, %v790
        %792 = vmatmul.f32.gmra.mxu0 %v272
        %v793 = vpop.f32.mrf.mxu0
        %v794 = vadd.f32 %v489, %v793
        %795 = vmatmul.f32.gmra.mxu0 %v274
        %v796 = vpop.f32.mrf.mxu0
        %v797 = vadd.f32 %v492, %v796
        %798 = vmatmul.f32.gmra.mxu0 %v276
        %v799 = vpop.f32.mrf.mxu0
        %v800 = vadd.f32 %v495, %v799
        %801 = vmatmul.f32.gmra.mxu0 %v278
        %v802 = vpop.f32.mrf.mxu0
        %v803 = vadd.f32 %v498, %v802
        %804 = vmatmul.f32.gmra.mxu0 %v280
        %v805 = vpop.f32.mrf.mxu0
        %v806 = vadd.f32 %v501, %v805
        %807 = vmatmul.f32.gmra.mxu0 %v282
        %v808 = vpop.f32.mrf.mxu0
        %v809 = vadd.f32 %v504, %v808
        %810 = vmatmul.f32.gmra.mxu0 %v284
        %v811 = vpop.f32.mrf.mxu0
        %v812 = vadd.f32 %v507, %v811
        %813 = vmatmul.f32.gmra.mxu0 %v286
        %v814 = vpop.f32.mrf.mxu0
        %v815 = vadd.f32 %v510, %v814
        %816 = vmatmul.f32.gmra.mxu0 %v288
        %v817 = vpop.f32.mrf.mxu0
        %v818 = vadd.f32 %v513, %v817
        %819 = vmatmul.f32.gmra.mxu0 %v290
        %v820 = vpop.f32.mrf.mxu0
        %v821 = vadd.f32 %v516, %v820
        %822 = vmatmul.f32.gmra.mxu0 %v292
        %v823 = vpop.f32.mrf.mxu0
        %v824 = vadd.f32 %v519, %v823
        %825 = vmatmul.f32.gmra.mxu0 %v294
        %v826 = vpop.f32.mrf.mxu0
        %v827 = vadd.f32 %v522, %v826
        %828 = vmatmul.f32.gmra.mxu0 %v296
        %v829 = vpop.f32.mrf.mxu0
        %v830 = vadd.f32 %v525, %v829
        %831 = vmatmul.f32.gmra.mxu0 %v298
        %v832 = vpop.f32.mrf.mxu0
        %v833 = vadd.f32 %v528, %v832
        %834 = vmatmul.f32.gmra.mxu0 %v300
        %v835 = vpop.f32.mrf.mxu0
        %v836 = vadd.f32 %v531, %v835
        %837 = vmatmul.f32.gmra.mxu0 %v302
        %v838 = vpop.f32.mrf.mxu0
        %v839 = vadd.f32 %v534, %v838
        %840 = vmatmul.f32.gmra.mxu0 %v304
        %v841 = vpop.f32.mrf.mxu0
        %v842 = vadd.f32 %v537, %v841
        %843 = vmatmul.f32.gmra.mxu0 %v306
        %v844 = vpop.f32.mrf.mxu0
        %v845 = vadd.f32 %v540, %v844
        %846 = vmatmul.f32.gmra.mxu0 %v308
        %v847 = vpop.f32.mrf.mxu0
        %v848 = vadd.f32 %v543, %v847
        %849 = vmatmul.f32.gmra.mxu0 %v310
        %v850 = vpop.f32.mrf.mxu0
        %v851 = vadd.f32 %v546, %v850
        %852 = vmatmul.f32.gmra.mxu0 %v312
        %v853 = vpop.f32.mrf.mxu0
        %v854 = vadd.f32 %v549, %v853
        %855 = vmatmul.f32.gmra.mxu0 %v314
        %v856 = vpop.f32.mrf.mxu0
        %v857 = vadd.f32 %v552, %v856
        %858 = vmatmul.f32.gmra.mxu0 %v316
        %v859 = vpop.f32.mrf.mxu0
        %v860 = vadd.f32 %v555, %v859
        %861 = vmatmul.f32.gmra.mxu0 %v318
        %v862 = vpop.f32.mrf.mxu0
        %v863 = vadd.f32 %v558, %v862
        %864 = vmatmul.f32.gmra.mxu0 %v320
        %v865 = vpop.f32.mrf.mxu0
        %v866 = vadd.f32 %v561, %v865
        %867 = vmatmul.f32.gmra.mxu0 %v322
        %v868 = vpop.f32.mrf.mxu0
        %v869 = vadd.f32 %v564, %v868
        %870 = vmatmul.f32.gmra.mxu0 %v324
        %v871 = vpop.f32.mrf.mxu0
        %v872 = vadd.f32 %v567, %v871
        %873 = vmatmul.f32.gmra.mxu0 %v326
        %v874 = vpop.f32.mrf.mxu0
        %v875 = vadd.f32 %v570, %v874
        %876 = vmatmul.f32.gmra.mxu0 %v328
        %v877 = vpop.f32.mrf.mxu0
        %v878 = vadd.f32 %v573, %v877
        %879 = vmatmul.f32.gmra.mxu0 %v330
        %v880 = vpop.f32.mrf.mxu0
        %v881 = vadd.f32 %v576, %v880
        %882 = vmatmul.f32.gmra.mxu0 %v332
        %v883 = vpop.f32.mrf.mxu0
        %v884 = vadd.f32 %v579, %v883
        %885 = vmatmul.f32.gmra.mxu0 %v334
        %v886 = vpop.f32.mrf.mxu0
        %v887 = vadd.f32 %v582, %v886
        %888 = vmatmul.f32.gmra.mxu0 %v336
        %v889 = vpop.f32.mrf.mxu0
        %v890 = vadd.f32 %v585, %v889
        %891 = vmatmul.f32.gmra.mxu0 %v338
        %v892 = vpop.f32.mrf.mxu0
        %v893 = vadd.f32 %v588, %v892
        %894 = vmatmul.f32.gmra.mxu0 %v340
        %v895 = vpop.f32.mrf.mxu0
        %v896 = vadd.f32 %v591, %v895
        %897 = vmatmul.f32.gmra.mxu0 %v342
        %v898 = vpop.f32.mrf.mxu0
        %v899 = vadd.f32 %v594, %v898
        %900 = vmatmul.f32.gmra.mxu0 %v344
        %v901 = vpop.f32.mrf.mxu0
        %v902 = vadd.f32 %v597, %v901
        %903 = vmatmul.f32.gmra.mxu0 %v346
        %v904 = vpop.f32.mrf.mxu0
        %v905 = vadd.f32 %v600, %v904
        %906 = vmatmul.f32.gmra.mxu0 %v348
        %v907 = vpop.f32.mrf.mxu0
        %v908 = vadd.f32 %v603, %v907
        %909 = vmatmul.f32.gmra.mxu0 %v350
        %v910 = vpop.f32.mrf.mxu0
        %v911 = vadd.f32 %v606, %v910
        %912 = vmatmul.f32.gmra.mxu0 %v352
        %v913 = vpop.f32.mrf.mxu0
        %v914 = vadd.f32 %v609, %v913
        %915 = vmatmul.f32.gmra.mxu0 %v354
        %v916 = vpop.f32.mrf.mxu0
        %v917 = vadd.f32 %v612, %v916
        %918 = vmatmul.f32.gmra.mxu0 %v356
        %v919 = vpop.f32.mrf.mxu0
        %v920 = vadd.f32 %v615, %v919
        %921 = vmatmul.f32.gmra.mxu0 %v358
        %v922 = vpop.f32.mrf.mxu0
        %v923 = vadd.f32 %v618, %v922
        %924 = vmatmul.f32.gmra.mxu0 %v360
        %v925 = vpop.f32.mrf.mxu0
        %v926 = vadd.f32 %v621, %v925
        %927 = vmatmul.f32.gmra.mxu0 %v362
        %v928 = vpop.f32.mrf.mxu0
        %v929 = vadd.f32 %v624, %v928
        %930 = vmatmul.f32.gmra.mxu0 %v364
        %v931 = vpop.f32.mrf.mxu0
        %v932 = vadd.f32 %v627, %v931
        %933 = vmatmul.f32.gmra.mxu0 %v366
        %v934 = vpop.f32.mrf.mxu0
        %v935 = vadd.f32 %v630, %v934
        %936 = vmatmul.f32.gmra.mxu0 %v368
        %v937 = vpop.f32.mrf.mxu0
        %v938 = vadd.f32 %v633, %v937
        %939 = vmatmul.f32.gmra.mxu0 %v370
        %v940 = vpop.f32.mrf.mxu0
        %v941 = vadd.f32 %v636, %v940
        %942 = vmatmul.f32.gmra.mxu0 %v372
        %v943 = vpop.f32.mrf.mxu0
        %v944 = vadd.f32 %v639, %v943
        %945 = vmatmul.f32.gmra.mxu0 %v374
        %v946 = vpop.f32.mrf.mxu0
        %v947 = vadd.f32 %v642, %v946
        %948 = vmatmul.f32.gmra.mxu0 %v376
        %v949 = vpop.f32.mrf.mxu0
        %v950 = vadd.f32 %v645, %v949
        %951 = vmatmul.f32.gmra.mxu0 %v378
        %v952 = vpop.f32.mrf.mxu0
        %v953 = vadd.f32 %v648, %v952
        %954 = vmatmul.f32.gmra.mxu0 %v380
        %v955 = vpop.f32.mrf.mxu0
        %v956 = vadd.f32 %v651, %v955
        %957 = vmatmul.f32.gmra.mxu0 %v382
        %v958 = vpop.f32.mrf.mxu0
        %v959 = vadd.f32 %v654, %v958
        %960 = vmatmul.f32.gmra.mxu0 %v384
        %v961 = vpop.f32.mrf.mxu0
        %v962 = vadd.f32 %v657, %v961
        %963 = vmatmul.f32.gmra.mxu0 %v386
        %v964 = vpop.f32.mrf.mxu0
        %v965 = vadd.f32 %v660, %v964
        %966 = vmatmul.f32.gmra.mxu0 %v388
        %v967 = vpop.f32.mrf.mxu0
        %v968 = vadd.f32 %v663, %v967
        %969 = vmatmul.f32.gmra.mxu0 %v390
        %v970 = vpop.f32.mrf.mxu0
        %v971 = vadd.f32 %v666, %v970
        %972 = vmatmul.f32.gmra.mxu0 %v392
        %v973 = vpop.f32.mrf.mxu0
        %v974 = vadd.f32 %v669, %v973
        %975 = vmatmul.f32.gmra.mxu0 %v394
        %v976 = vpop.f32.mrf.mxu0
        %v977 = vadd.f32 %v672, %v976
        %978 = vmatmul.f32.gmra.mxu0 %v396
        %v979 = vpop.f32.mrf.mxu0
        %v980 = vadd.f32 %v675, %v979
        %981 = vmatmul.f32.gmra.mxu0 %v398
        %v982 = vpop.f32.mrf.mxu0
        %v983 = vadd.f32 %v678, %v982
        %984 = vmatmul.f32.gmra.mxu0 %v400
        %v985 = vpop.f32.mrf.mxu0
        %v986 = vadd.f32 %v681, %v985
        %987 = vmatmul.f32.gmra.mxu0 %v402
        %v988 = vpop.f32.mrf.mxu0
        %v989 = vadd.f32 %v684, %v988
        %990 = vmatmul.f32.gmra.mxu0 %v404
        %v991 = vpop.f32.mrf.mxu0
        %v992 = vadd.f32 %v687, %v991
        %993 = vmatmul.f32.gmra.mxu0 %v406
        %v994 = vpop.f32.mrf.mxu0
        %v995 = vadd.f32 %v690, %v994
        %996 = vmatmul.f32.gmra.mxu0 %v408
        %v997 = vpop.f32.mrf.mxu0
        %v998 = vadd.f32 %v693, %v997
        %999 = vmatmul.f32.gmra.mxu0 %v410
        %v1000 = vpop.f32.mrf.mxu0
        %v1001 = vadd.f32 %v696, %v1000
        %1002 = vmatmul.f32.gmra.mxu0 %v412
        %v1003 = vpop.f32.mrf.mxu0
        %v1004 = vadd.f32 %v699, %v1003
        %1005 = vmatmul.f32.gmra.mxu0 %v414
        %v1006 = vpop.f32.mrf.mxu0
        %v1007 = vadd.f32 %v702, %v1006
        %1008 = vmatmul.f32.gmra.mxu0 %v416
        %v1009 = vpop.f32.mrf.mxu0
        %v1010 = vadd.f32 %v705, %v1009
        %1011 = vmatmul.f32.gmra.mxu0 %v418
        %v1012 = vpop.f32.mrf.mxu0
        %v1013 = vadd.f32 %v708, %v1012
        %1014 = vmatmul.f32.gmra.mxu0 %v420
        %v1015 = vpop.f32.mrf.mxu0
        %v1016 = vadd.f32 %v711, %v1015
        %1017 = vmatmul.f32.gmra.mxu0 %v422
        %v1018 = vpop.f32.mrf.mxu0
        %v1019 = vadd.f32 %v714, %v1018
        %1020 = vmatmul.f32.gmra.mxu0 %v424
        %v1021 = vpop.f32.mrf.mxu0
        %v1022 = vadd.f32 %v717, %v1021
        %1023 = vmatmul.f32.gmra.mxu0 %v426
        %v1024 = vpop.f32.mrf.mxu0
        %v1025 = vadd.f32 %v720, %v1024
        %1026 = vmatmul.f32.gmra.mxu0 %v428
        %v1027 = vpop.f32.mrf.mxu0
        %v1028 = vadd.f32 %v723, %v1027
        %1029 = vmatmul.f32.gmra.mxu0 %v430
        %v1030 = vpop.f32.mrf.mxu0
        %v1031 = vadd.f32 %v726, %v1030
        %1032 = vmatmul.f32.gmra.mxu0 %v432
        %v1033 = vpop.f32.mrf.mxu0
        %v1034 = vadd.f32 %v729, %v1033
        %1035 = vmatmul.f32.gmra.mxu0 %v434
        %v1036 = vpop.f32.mrf.mxu0
        %v1037 = vadd.f32 %v732, %v1036
        %1038 = vmatmul.f32.gmra.mxu0 %v436
        %v1039 = vpop.f32.mrf.mxu0
        %v1040 = vadd.f32 %v735, %v1039
        %1041 = vmatmul.f32.gmra.mxu0 %v438
        %v1042 = vpop.f32.mrf.mxu0
        %v1043 = vadd.f32 %v738, %v1042
        %1044 = vmatmul.f32.gmra.mxu0 %v440
        %v1045 = vpop.f32.mrf.mxu0
        %v1046 = vadd.f32 %v741, %v1045
        %1047 = vmatmul.f32.gmra.mxu0 %v442
        %v1048 = vpop.f32.mrf.mxu0
        %v1049 = vadd.f32 %v744, %v1048
        %1050 = vmatmul.f32.gmra.mxu0 %v444
        %v1051 = vpop.f32.mrf.mxu0
        %v1052 = vadd.f32 %v747, %v1051
        %1053 = vmatmul.f32.gmra.mxu0 %v446
        %v1054 = vpop.f32.mrf.mxu0
        %v1055 = vadd.f32 %v750, %v1054
        %1056 = vdwg.mxu0
        %1057 = vxpose.xlu0.b32.start [1/16] %v770, 128
        %1058 = vxpose.xlu0.b32.cont [2/16] %v773, 128
        %1059 = vxpose.xlu0.b32.cont [3/16] %v776, 128
        %1060 = vxpose.xlu0.b32.cont [4/16] %v779, 128
        %1061 = vxpose.xlu0.b32.cont [5/16] %v782, 128
        %1062 = vxpose.xlu0.b32.cont [6/16] %v785, 128
        %1063 = vxpose.xlu0.b32.cont [7/16] %v788, 128
        %1064 = vxpose.xlu0.b32.cont [8/16] %v791, 128
        %1065 = vxpose.xlu0.b32.cont [9/16] %v794, 128
        %1066 = vxpose.xlu0.b32.cont [10/16] %v797, 128
        %1067 = vxpose.xlu0.b32.cont [11/16] %v800, 128
        %1068 = vxpose.xlu0.b32.cont [12/16] %v803, 128
        %1069 = vxpose.xlu0.b32.cont [13/16] %v806, 128
        %1070 = vxpose.xlu0.b32.cont [14/16] %v809, 128
        %1071 = vxpose.xlu0.b32.cont [15/16] %v812, 128
        %1072 = vxpose.xlu0.b32.end [16/16] %v815, 128
        %v1073 = vpop.trf.xlu0
        %v1074 = vpop.trf.xlu0
        %v1075 = vpop.trf.xlu0
        %v1076 = vpop.trf.xlu0
        %v1077 = vpop.trf.xlu0
        %v1078 = vpop.trf.xlu0
        %v1079 = vpop.trf.xlu0
        %v1080 = vpop.trf.xlu0
        %v1081 = vpop.trf.xlu0
        %v1082 = vpop.trf.xlu0
        %v1083 = vpop.trf.xlu0
        %v1084 = vpop.trf.xlu0
        %v1085 = vpop.trf.xlu0
        %v1086 = vpop.trf.xlu0
        %v1087 = vpop.trf.xlu0
        %v1088 = vpop.trf.xlu0
        %1089 = vxpose.xlu0.b32.start [1/16] %v818, 128
        %1090 = vxpose.xlu0.b32.cont [2/16] %v821, 128
        %1091 = vxpose.xlu0.b32.cont [3/16] %v824, 128
        %1092 = vxpose.xlu0.b32.cont [4/16] %v827, 128
        %1093 = vxpose.xlu0.b32.cont [5/16] %v830, 128
        %1094 = vxpose.xlu0.b32.cont [6/16] %v833, 128
        %1095 = vxpose.xlu0.b32.cont [7/16] %v836, 128
        %1096 = vxpose.xlu0.b32.cont [8/16] %v839, 128
        %1097 = vxpose.xlu0.b32.cont [9/16] %v842, 128
        %1098 = vxpose.xlu0.b32.cont [10/16] %v845, 128
        %1099 = vxpose.xlu0.b32.cont [11/16] %v848, 128
        %1100 = vxpose.xlu0.b32.cont [12/16] %v851, 128
        %1101 = vxpose.xlu0.b32.cont [13/16] %v854, 128
        %1102 = vxpose.xlu0.b32.cont [14/16] %v857, 128
        %1103 = vxpose.xlu0.b32.cont [15/16] %v860, 128
        %1104 = vxpose.xlu0.b32.end [16/16] %v863, 128
        %v1105 = vpop.trf.xlu0
        %v1106 = vpop.trf.xlu0
        %v1107 = vpop.trf.xlu0
        %v1108 = vpop.trf.xlu0
        %v1109 = vpop.trf.xlu0
        %v1110 = vpop.trf.xlu0
        %v1111 = vpop.trf.xlu0
        %v1112 = vpop.trf.xlu0
        %v1113 = vpop.trf.xlu0
        %v1114 = vpop.trf.xlu0
        %v1115 = vpop.trf.xlu0
        %v1116 = vpop.trf.xlu0
        %v1117 = vpop.trf.xlu0
        %v1118 = vpop.trf.xlu0
        %v1119 = vpop.trf.xlu0
        %v1120 = vpop.trf.xlu0
        %v1121 = vmul.f32 %v1073, 0.088388346
        %v1122 = vmul.f32 %v1074, 0.088388346
        %v1123 = vmul.f32 %v1105, 0.088388346
        %v1124 = vmul.f32 %v1106, 0.088388346
        %1125 = vmatpush.msra.mxu0 %v911
        %1126 = vmatpush.msra.mxu0 %v908
        %1127 = vmatpush.msra.mxu0 %v905
        %1128 = vmatpush.msra.mxu0 %v902
        %1129 = vmatpush.msra.mxu0 %v899
        %1130 = vmatpush.msra.mxu0 %v896
        %1131 = vmatpush.msra.mxu0 %v893
        %1132 = vmatpush.msra.mxu0 %v890
        %1133 = vmatpush.msra.mxu0 %v887
        %1134 = vmatpush.msra.mxu0 %v884
        %1135 = vmatpush.msra.mxu0 %v881
        %1136 = vmatpush.msra.mxu0 %v878
        %1137 = vmatpush.msra.mxu0 %v875
        %1138 = vmatpush.msra.mxu0 %v872
        %1139 = vmatpush.msra.mxu0 %v869
        %1140 = vmatpush.msra.mxu0 %v866
        %1141 = vmatmul.f32.gmra.mxu0 %v1121
        %v1142 = vpop.f32.mrf.mxu0
        %v1143 = vadd.f32 0.0, %v1142
        %1144 = vmatmul.f32.gmra.mxu0 %v1122
        %v1145 = vpop.f32.mrf.mxu0
        %v1146 = vadd.f32 0.0, %v1145
        %1147 = vdwg.mxu0
        %1148 = vmatpush.msra.mxu0 %v959
        %1149 = vmatpush.msra.mxu0 %v956
        %1150 = vmatpush.msra.mxu0 %v953
        %1151 = vmatpush.msra.mxu0 %v950
        %1152 = vmatpush.msra.mxu0 %v947
        %1153 = vmatpush.msra.mxu0 %v944
        %1154 = vmatpush.msra.mxu0 %v941
        %1155 = vmatpush.msra.mxu0 %v938
        %1156 = vmatpush.msra.mxu0 %v935
        %1157 = vmatpush.msra.mxu0 %v932
        %1158 = vmatpush.msra.mxu0 %v929
        %1159 = vmatpush.msra.mxu0 %v926
        %1160 = vmatpush.msra.mxu0 %v923
        %1161 = vmatpush.msra.mxu0 %v920
        %1162 = vmatpush.msra.mxu0 %v917
        %1163 = vmatpush.msra.mxu0 %v914
        %1164 = vmatmul.f32.gmra.mxu0 %v1123
        %v1165 = vpop.f32.mrf.mxu0
        %v1166 = vadd.f32 0.0, %v1165
        %1167 = vmatmul.f32.gmra.mxu0 %v1124
        %v1168 = vpop.f32.mrf.mxu0
        %v1169 = vadd.f32 0.0, %v1168
        %1170 = vdwg.mxu0
        %vm1171 = vcmask 130048
        %v1172 = vsel %vm1171, %v1143, -inf
        %1173 = vmax.xlane.f32.xlu0 %v1172
        %v1174 = vpop.xlane.xlu0 %1173
        %v1175 = vsel %vm1171, %v1146, -inf
        %1176 = vmax.xlane.f32.xlu0 %v1175
        %v1177 = vpop.xlane.xlu0 %1176
        %v1178 = vsel %vm1171, %v1166, -inf
        %1179 = vmax.xlane.f32.xlu0 %v1178
        %v1180 = vpop.xlane.xlu0 %1179
        %v1181 = vsel %vm1171, %v1169, -inf
        %1182 = vmax.xlane.f32.xlu0 %v1181
        %v1183 = vpop.xlane.xlu0 %1182
        %v1184 = vsub.f32 %v1143, %v1174
        %v1185 = vsub.f32 %v1146, %v1177
        %v1186 = vsub.f32 %v1166, %v1180
        %v1187 = vsub.f32 %v1169, %v1183
        %v1188 = vmul.f32 %v1184, 1.442695
        %v1189 = vpow.pop %v1188
        %v1190 = vmul.f32 %v1185, 1.442695
        %v1191 = vpow.pop %v1190
        %v1192 = vmul.f32 %v1186, 1.442695
        %v1193 = vpow.pop %v1192
        %v1194 = vmul.f32 %v1187, 1.442695
        %v1195 = vpow.pop %v1194
        %v1196 = vsel %vm1171, %v1189, 0.0
        %1197 = vadd.xlane.f32.xlu0 %v1196
        %v1198 = vpop.xlane.xlu0 %1197
        %v1199 = vsel %vm1171, %v1191, 0.0
        %1200 = vadd.xlane.f32.xlu0 %v1199
        %v1201 = vpop.xlane.xlu0 %1200
        %v1202 = vsel %vm1171, %v1193, 0.0
        %1203 = vadd.xlane.f32.xlu0 %v1202
        %v1204 = vpop.xlane.xlu0 %1203
        %v1205 = vsel %vm1171, %v1195, 0.0
        %1206 = vadd.xlane.f32.xlu0 %v1205
        %v1207 = vpop.xlane.xlu0 %1206
        %v1208 = vrcp.pop %v1198
        %v1209 = vmul.f32 %v1198, %v1208
        %v1210 = vsub.f32 1.0, %v1209
        %v1211 = vmul.f32 %v1208, %v1210
        %v1212 = vadd.f32 %v1208, %v1211
        %vm1213 = vweird.f32 %v1198
        %vm1214 = vweird.f32 %v1208
        %vm1215 = vmor %vm1213, %vm1214
        %v1216 = vsel %vm1215, %v1208, %v1212
        %v1217 = vand.u32 2147483647, %v1198
        %vm1218 = vcmp.eq.f32.partialorder %v1217, 8.507059e+37
        %v1219 = vand.u32 %v1198, 2147483648
        %v1220 = vor.u32 1.1754944e-38, %v1219
        %v1221 = vsel %vm1218, %v1220, %v1216
        %v1222 = vmul.f32 %v1189, %v1221
        %v1223 = vrcp.pop %v1201
        %v1224 = vmul.f32 %v1201, %v1223
        %v1225 = vsub.f32 1.0, %v1224
        %v1226 = vmul.f32 %v1223, %v1225
        %v1227 = vadd.f32 %v1223, %v1226
        %vm1228 = vweird.f32 %v1201
        %vm1229 = vweird.f32 %v1223
        %vm1230 = vmor %vm1228, %vm1229
        %v1231 = vsel %vm1230, %v1223, %v1227
        %v1232 = vand.u32 2147483647, %v1201
        %vm1233 = vcmp.eq.f32.partialorder %v1232, 8.507059e+37
        %v1234 = vand.u32 %v1201, 2147483648
        %v1235 = vor.u32 1.1754944e-38, %v1234
        %v1236 = vsel %vm1233, %v1235, %v1231
        %v1237 = vmul.f32 %v1191, %v1236
        %v1238 = vrcp.pop %v1204
        %v1239 = vmul.f32 %v1204, %v1238
        %v1240 = vsub.f32 1.0, %v1239
        %v1241 = vmul.f32 %v1238, %v1240
        %v1242 = vadd.f32 %v1238, %v1241
        %vm1243 = vweird.f32 %v1204
        %vm1244 = vweird.f32 %v1238
        %vm1245 = vmor %vm1243, %vm1244
        %v1246 = vsel %vm1245, %v1238, %v1242
        %v1247 = vand.u32 2147483647, %v1204
        %vm1248 = vcmp.eq.f32.partialorder %v1247, 8.507059e+37
        %v1249 = vand.u32 %v1204, 2147483648
        %v1250 = vor.u32 1.1754944e-38, %v1249
        %v1251 = vsel %vm1248, %v1250, %v1246
        %v1252 = vmul.f32 %v1193, %v1251
        %v1253 = vrcp.pop %v1207
        %v1254 = vmul.f32 %v1207, %v1253
        %v1255 = vsub.f32 1.0, %v1254
        %v1256 = vmul.f32 %v1253, %v1255
        %v1257 = vadd.f32 %v1253, %v1256
        %vm1258 = vweird.f32 %v1207
        %vm1259 = vweird.f32 %v1253
        %vm1260 = vmor %vm1258, %vm1259
        %v1261 = vsel %vm1260, %v1253, %v1257
        %v1262 = vand.u32 2147483647, %v1207
        %vm1263 = vcmp.eq.f32.partialorder %v1262, 8.507059e+37
        %v1264 = vand.u32 %v1207, 2147483648
        %v1265 = vor.u32 1.1754944e-38, %v1264
        %v1266 = vsel %vm1263, %v1265, %v1261
        %v1267 = vmul.f32 %v1195, %v1266
        %v1269 = vsel %vm1171, %v962, 0
        %v1272 = vsel %vm1171, %v965, 0
        %v1275 = vsel %vm1171, %v968, 0
        %v1278 = vsel %vm1171, %v971, 0
        %v1281 = vsel %vm1171, %v974, 0
        %v1284 = vsel %vm1171, %v977, 0
        %v1287 = vsel %vm1171, %v980, 0
        %v1290 = vsel %vm1171, %v983, 0
        %v1293 = vsel %vm1171, %v986, 0
        %v1296 = vsel %vm1171, %v989, 0
        %v1299 = vsel %vm1171, %v992, 0
        %v1302 = vsel %vm1171, %v995, 0
        %v1305 = vsel %vm1171, %v998, 0
        %v1308 = vsel %vm1171, %v1001, 0
        %v1311 = vsel %vm1171, %v1004, 0
        %v1314 = vsel %vm1171, %v1007, 0
        %v1317 = vsel %vm1171, %v1222, 0
        %v1320 = vsel %vm1171, %v1237, 0
        %1322 = vmatpush.xpose.msra.mxu0 0.0
        %1323 = vmatpush.xpose.msra.mxu0 0.0
        %1324 = vmatpush.xpose.msra.mxu0 0.0
        %1325 = vmatpush.xpose.msra.mxu0 0.0
        %1326 = vmatpush.xpose.msra.mxu0 0.0
        %1327 = vmatpush.xpose.msra.mxu0 0.0
        %1328 = vmatpush.xpose.msra.mxu0 0.0
        %1329 = vmatpush.xpose.msra.mxu0 0.0
        %1330 = vmatpush.xpose.msra.mxu0 0.0
        %1331 = vmatpush.xpose.msra.mxu0 0.0
        %1332 = vmatpush.xpose.msra.mxu0 0.0
        %1333 = vmatpush.xpose.msra.mxu0 0.0
        %1334 = vmatpush.xpose.msra.mxu0 0.0
        %1335 = vmatpush.xpose.msra.mxu0 0.0
        %1336 = vmatpush.xpose.msra.mxu0 %v1320
        %1337 = vmatpush.xpose.msra.mxu0 %v1317
        %1338 = vmatmul.f32.gmra.mxu0 %v1269
        %v1339 = vpop.f32.mrf.mxu0
        %v1340 = vadd.f32 0.0, %v1339
        %1341 = vmatmul.f32.gmra.mxu0 %v1272
        %v1342 = vpop.f32.mrf.mxu0
        %v1343 = vadd.f32 0.0, %v1342
        %1344 = vmatmul.f32.gmra.mxu0 %v1275
        %v1345 = vpop.f32.mrf.mxu0
        %v1346 = vadd.f32 0.0, %v1345
        %1347 = vmatmul.f32.gmra.mxu0 %v1278
        %v1348 = vpop.f32.mrf.mxu0
        %v1349 = vadd.f32 0.0, %v1348
        %1350 = vmatmul.f32.gmra.mxu0 %v1281
        %v1351 = vpop.f32.mrf.mxu0
        %v1352 = vadd.f32 0.0, %v1351
        %1353 = vmatmul.f32.gmra.mxu0 %v1284
        %v1354 = vpop.f32.mrf.mxu0
        %v1355 = vadd.f32 0.0, %v1354
        %1356 = vmatmul.f32.gmra.mxu0 %v1287
        %v1357 = vpop.f32.mrf.mxu0
        %v1358 = vadd.f32 0.0, %v1357
        %1359 = vmatmul.f32.gmra.mxu0 %v1290
        %v1360 = vpop.f32.mrf.mxu0
        %v1361 = vadd.f32 0.0, %v1360
        %1362 = vmatmul.f32.gmra.mxu0 %v1293
        %v1363 = vpop.f32.mrf.mxu0
        %v1364 = vadd.f32 0.0, %v1363
        %1365 = vmatmul.f32.gmra.mxu0 %v1296
        %v1366 = vpop.f32.mrf.mxu0
        %v1367 = vadd.f32 0.0, %v1366
        %1368 = vmatmul.f32.gmra.mxu0 %v1299
        %v1369 = vpop.f32.mrf.mxu0
        %v1370 = vadd.f32 0.0, %v1369
        %1371 = vmatmul.f32.gmra.mxu0 %v1302
        %v1372 = vpop.f32.mrf.mxu0
        %v1373 = vadd.f32 0.0, %v1372
        %1374 = vmatmul.f32.gmra.mxu0 %v1305
        %v1375 = vpop.f32.mrf.mxu0
        %v1376 = vadd.f32 0.0, %v1375
        %1377 = vmatmul.f32.gmra.mxu0 %v1308
        %v1378 = vpop.f32.mrf.mxu0
        %v1379 = vadd.f32 0.0, %v1378
        %1380 = vmatmul.f32.gmra.mxu0 %v1311
        %v1381 = vpop.f32.mrf.mxu0
        %v1382 = vadd.f32 0.0, %v1381
        %1383 = vmatmul.f32.gmra.mxu0 %v1314
        %v1384 = vpop.f32.mrf.mxu0
        %v1385 = vadd.f32 0.0, %v1384
        %1386 = vdwg.mxu0
        %v1388 = vsel %vm1171, %v1010, 0
        %v1391 = vsel %vm1171, %v1013, 0
        %v1394 = vsel %vm1171, %v1016, 0
        %v1397 = vsel %vm1171, %v1019, 0
        %v1400 = vsel %vm1171, %v1022, 0
        %v1403 = vsel %vm1171, %v1025, 0
        %v1406 = vsel %vm1171, %v1028, 0
        %v1409 = vsel %vm1171, %v1031, 0
        %v1412 = vsel %vm1171, %v1034, 0
        %v1415 = vsel %vm1171, %v1037, 0
        %v1418 = vsel %vm1171, %v1040, 0
        %v1421 = vsel %vm1171, %v1043, 0
        %v1424 = vsel %vm1171, %v1046, 0
        %v1427 = vsel %vm1171, %v1049, 0
        %v1430 = vsel %vm1171, %v1052, 0
        %v1433 = vsel %vm1171, %v1055, 0
        %v1436 = vsel %vm1171, %v1252, 0
        %v1439 = vsel %vm1171, %v1267, 0
        %1441 = vmatpush.xpose.msra.mxu0 0.0
        %1442 = vmatpush.xpose.msra.mxu0 0.0
        %1443 = vmatpush.xpose.msra.mxu0 0.0
        %1444 = vmatpush.xpose.msra.mxu0 0.0
        %1445 = vmatpush.xpose.msra.mxu0 0.0
        %1446 = vmatpush.xpose.msra.mxu0 0.0
        %1447 = vmatpush.xpose.msra.mxu0 0.0
        %1448 = vmatpush.xpose.msra.mxu0 0.0
        %1449 = vmatpush.xpose.msra.mxu0 0.0
        %1450 = vmatpush.xpose.msra.mxu0 0.0
        %1451 = vmatpush.xpose.msra.mxu0 0.0
        %1452 = vmatpush.xpose.msra.mxu0 0.0
        %1453 = vmatpush.xpose.msra.mxu0 0.0
        %1454 = vmatpush.xpose.msra.mxu0 0.0
        %1455 = vmatpush.xpose.msra.mxu0 %v1439
        %1456 = vmatpush.xpose.msra.mxu0 %v1436
        %1457 = vmatmul.f32.gmra.mxu0 %v1388
        %v1458 = vpop.f32.mrf.mxu0
        %v1459 = vadd.f32 0.0, %v1458
        %1460 = vmatmul.f32.gmra.mxu0 %v1391
        %v1461 = vpop.f32.mrf.mxu0
        %v1462 = vadd.f32 0.0, %v1461
        %1463 = vmatmul.f32.gmra.mxu0 %v1394
        %v1464 = vpop.f32.mrf.mxu0
        %v1465 = vadd.f32 0.0, %v1464
        %1466 = vmatmul.f32.gmra.mxu0 %v1397
        %v1467 = vpop.f32.mrf.mxu0
        %v1468 = vadd.f32 0.0, %v1467
        %1469 = vmatmul.f32.gmra.mxu0 %v1400
        %v1470 = vpop.f32.mrf.mxu0
        %v1471 = vadd.f32 0.0, %v1470
        %1472 = vmatmul.f32.gmra.mxu0 %v1403
        %v1473 = vpop.f32.mrf.mxu0
        %v1474 = vadd.f32 0.0, %v1473
        %1475 = vmatmul.f32.gmra.mxu0 %v1406
        %v1476 = vpop.f32.mrf.mxu0
        %v1477 = vadd.f32 0.0, %v1476
        %1478 = vmatmul.f32.gmra.mxu0 %v1409
        %v1479 = vpop.f32.mrf.mxu0
        %v1480 = vadd.f32 0.0, %v1479
        %1481 = vmatmul.f32.gmra.mxu0 %v1412
        %v1482 = vpop.f32.mrf.mxu0
        %v1483 = vadd.f32 0.0, %v1482
        %1484 = vmatmul.f32.gmra.mxu0 %v1415
        %v1485 = vpop.f32.mrf.mxu0
        %v1486 = vadd.f32 0.0, %v1485
        %1487 = vmatmul.f32.gmra.mxu0 %v1418
        %v1488 = vpop.f32.mrf.mxu0
        %v1489 = vadd.f32 0.0, %v1488
        %1490 = vmatmul.f32.gmra.mxu0 %v1421
        %v1491 = vpop.f32.mrf.mxu0
        %v1492 = vadd.f32 0.0, %v1491
        %1493 = vmatmul.f32.gmra.mxu0 %v1424
        %v1494 = vpop.f32.mrf.mxu0
        %v1495 = vadd.f32 0.0, %v1494
        %1496 = vmatmul.f32.gmra.mxu0 %v1427
        %v1497 = vpop.f32.mrf.mxu0
        %v1498 = vadd.f32 0.0, %v1497
        %1499 = vmatmul.f32.gmra.mxu0 %v1430
        %v1500 = vpop.f32.mrf.mxu0
        %v1501 = vadd.f32 0.0, %v1500
        %1502 = vmatmul.f32.gmra.mxu0 %v1433
        %v1503 = vpop.f32.mrf.mxu0
        %v1504 = vadd.f32 0.0, %v1503
        %1505 = vdwg.mxu0
        %v1506 = vld [vmem:[#allocation7] sm:$0xff]
        %v1507 = vld [vmem:[#allocation7 + $0x8] sm:$0xff]
        %v1508 = vld [vmem:[#allocation7 + $0x10] sm:$0xff]
        %v1509 = vld [vmem:[#allocation7 + $0x18] sm:$0xff]
        %v1510 = vld [vmem:[#allocation7 + $0x20] sm:$0xff]
        %v1511 = vld [vmem:[#allocation7 + $0x28] sm:$0xff]
        %v1512 = vld [vmem:[#allocation7 + $0x30] sm:$0xff]
        %v1513 = vld [vmem:[#allocation7 + $0x38] sm:$0xff]
        %v1514 = vld [vmem:[#allocation7 + $0x40] sm:$0xff]
        %v1515 = vld [vmem:[#allocation7 + $0x48] sm:$0xff]
        %v1516 = vld [vmem:[#allocation7 + $0x50] sm:$0xff]
        %v1517 = vld [vmem:[#allocation7 + $0x58] sm:$0xff]
        %v1518 = vld [vmem:[#allocation7 + $0x60] sm:$0xff]
        %v1519 = vld [vmem:[#allocation7 + $0x68] sm:$0xff]
        %v1520 = vld [vmem:[#allocation7 + $0x70] sm:$0xff]
        %v1521 = vld [vmem:[#allocation7 + $0x78] sm:$0xff]
        %v1522 = vld [vmem:[#allocation7 + $0x80] sm:$0xff]
        %v1523 = vld [vmem:[#allocation7 + $0x88] sm:$0xff]
        %v1524 = vld [vmem:[#allocation7 + $0x90] sm:$0xff]
        %v1525 = vld [vmem:[#allocation7 + $0x98] sm:$0xff]
        %v1526 = vld [vmem:[#allocation7 + $0xa0] sm:$0xff]
        %v1527 = vld [vmem:[#allocation7 + $0xa8] sm:$0xff]
        %v1528 = vld [vmem:[#allocation7 + $0xb0] sm:$0xff]
        %v1529 = vld [vmem:[#allocation7 + $0xb8] sm:$0xff]
        %v1530 = vld [vmem:[#allocation7 + $0xc0] sm:$0xff]
        %v1531 = vld [vmem:[#allocation7 + $0xc8] sm:$0xff]
        %v1532 = vld [vmem:[#allocation7 + $0xd0] sm:$0xff]
        %v1533 = vld [vmem:[#allocation7 + $0xd8] sm:$0xff]
        %v1534 = vld [vmem:[#allocation7 + $0xe0] sm:$0xff]
        %v1535 = vld [vmem:[#allocation7 + $0xe8] sm:$0xff]
        %v1536 = vld [vmem:[#allocation7 + $0xf0] sm:$0xff]
        %v1537 = vld [vmem:[#allocation7 + $0xf8] sm:$0xff]
        %v1538 = vld [vmem:[#allocation7 + $0x100] sm:$0xff]
        %v1539 = vld [vmem:[#allocation7 + $0x108] sm:$0xff]
        %v1540 = vld [vmem:[#allocation7 + $0x110] sm:$0xff]
        %v1541 = vld [vmem:[#allocation7 + $0x118] sm:$0xff]
        %v1542 = vld [vmem:[#allocation7 + $0x120] sm:$0xff]
        %v1543 = vld [vmem:[#allocation7 + $0x128] sm:$0xff]
        %v1544 = vld [vmem:[#allocation7 + $0x130] sm:$0xff]
        %v1545 = vld [vmem:[#allocation7 + $0x138] sm:$0xff]
        %v1546 = vld [vmem:[#allocation7 + $0x140] sm:$0xff]
        %v1547 = vld [vmem:[#allocation7 + $0x148] sm:$0xff]
        %v1548 = vld [vmem:[#allocation7 + $0x150] sm:$0xff]
        %v1549 = vld [vmem:[#allocation7 + $0x158] sm:$0xff]
        %v1550 = vld [vmem:[#allocation7 + $0x160] sm:$0xff]
        %v1551 = vld [vmem:[#allocation7 + $0x168] sm:$0xff]
        %v1552 = vld [vmem:[#allocation7 + $0x170] sm:$0xff]
        %v1553 = vld [vmem:[#allocation7 + $0x178] sm:$0xff]
        %v1554 = vld [vmem:[#allocation7 + $0x180] sm:$0xff]
        %v1555 = vld [vmem:[#allocation7 + $0x188] sm:$0xff]
        %v1556 = vld [vmem:[#allocation7 + $0x190] sm:$0xff]
        %v1557 = vld [vmem:[#allocation7 + $0x198] sm:$0xff]
        %v1558 = vld [vmem:[#allocation7 + $0x1a0] sm:$0xff]
        %v1559 = vld [vmem:[#allocation7 + $0x1a8] sm:$0xff]
        %v1560 = vld [vmem:[#allocation7 + $0x1b0] sm:$0xff]
        %v1561 = vld [vmem:[#allocation7 + $0x1b8] sm:$0xff]
        %v1562 = vld [vmem:[#allocation7 + $0x1c0] sm:$0xff]
        %v1563 = vld [vmem:[#allocation7 + $0x1c8] sm:$0xff]
        %v1564 = vld [vmem:[#allocation7 + $0x1d0] sm:$0xff]
        %v1565 = vld [vmem:[#allocation7 + $0x1d8] sm:$0xff]
        %v1566 = vld [vmem:[#allocation7 + $0x1e0] sm:$0xff]
        %v1567 = vld [vmem:[#allocation7 + $0x1e8] sm:$0xff]
        %v1568 = vld [vmem:[#allocation7 + $0x1f0] sm:$0xff]
        %v1569 = vld [vmem:[#allocation7 + $0x1f8] sm:$0xff]
        %1570 = vmatpush.msra.mxu0 %v1385
        %1571 = vmatpush.msra.mxu0 %v1382
        %1572 = vmatpush.msra.mxu0 %v1379
        %1573 = vmatpush.msra.mxu0 %v1376
        %1574 = vmatpush.msra.mxu0 %v1373
        %1575 = vmatpush.msra.mxu0 %v1370
        %1576 = vmatpush.msra.mxu0 %v1367
        %1577 = vmatpush.msra.mxu0 %v1364
        %1578 = vmatpush.msra.mxu0 %v1361
        %1579 = vmatpush.msra.mxu0 %v1358
        %1580 = vmatpush.msra.mxu0 %v1355
        %1581 = vmatpush.msra.mxu0 %v1352
        %1582 = vmatpush.msra.mxu0 %v1349
        %1583 = vmatpush.msra.mxu0 %v1346
        %1584 = vmatpush.msra.mxu0 %v1343
        %1585 = vmatpush.msra.mxu0 %v1340
        %1586 = vmatmul.f32.gmra.mxu0 %v1506
        %v1587 = vpop.f32.mrf.mxu0
        %v1588 = vadd.f32 0.0, %v1587
        %1589 = vmatmul.f32.gmra.mxu0 %v1508
        %v1590 = vpop.f32.mrf.mxu0
        %v1591 = vadd.f32 0.0, %v1590
        %1592 = vmatmul.f32.gmra.mxu0 %v1510
        %v1593 = vpop.f32.mrf.mxu0
        %v1594 = vadd.f32 0.0, %v1593
        %1595 = vmatmul.f32.gmra.mxu0 %v1512
        %v1596 = vpop.f32.mrf.mxu0
        %v1597 = vadd.f32 0.0, %v1596
        %1598 = vmatmul.f32.gmra.mxu0 %v1514
        %v1599 = vpop.f32.mrf.mxu0
        %v1600 = vadd.f32 0.0, %v1599
        %1601 = vmatmul.f32.gmra.mxu0 %v1516
        %v1602 = vpop.f32.mrf.mxu0
        %v1603 = vadd.f32 0.0, %v1602
        %1604 = vmatmul.f32.gmra.mxu0 %v1518
        %v1605 = vpop.f32.mrf.mxu0
        %v1606 = vadd.f32 0.0, %v1605
        %1607 = vmatmul.f32.gmra.mxu0 %v1520
        %v1608 = vpop.f32.mrf.mxu0
        %v1609 = vadd.f32 0.0, %v1608
        %1610 = vmatmul.f32.gmra.mxu0 %v1522
        %v1611 = vpop.f32.mrf.mxu0
        %v1612 = vadd.f32 0.0, %v1611
        %1613 = vmatmul.f32.gmra.mxu0 %v1524
        %v1614 = vpop.f32.mrf.mxu0
        %v1615 = vadd.f32 0.0, %v1614
        %1616 = vmatmul.f32.gmra.mxu0 %v1526
        %v1617 = vpop.f32.mrf.mxu0
        %v1618 = vadd.f32 0.0, %v1617
        %1619 = vmatmul.f32.gmra.mxu0 %v1528
        %v1620 = vpop.f32.mrf.mxu0
        %v1621 = vadd.f32 0.0, %v1620
        %1622 = vmatmul.f32.gmra.mxu0 %v1530
        %v1623 = vpop.f32.mrf.mxu0
        %v1624 = vadd.f32 0.0, %v1623
        %1625 = vmatmul.f32.gmra.mxu0 %v1532
        %v1626 = vpop.f32.mrf.mxu0
        %v1627 = vadd.f32 0.0, %v1626
        %1628 = vmatmul.f32.gmra.mxu0 %v1534
        %v1629 = vpop.f32.mrf.mxu0
        %v1630 = vadd.f32 0.0, %v1629
        %1631 = vmatmul.f32.gmra.mxu0 %v1536
        %v1632 = vpop.f32.mrf.mxu0
        %v1633 = vadd.f32 0.0, %v1632
        %1634 = vmatmul.f32.gmra.mxu0 %v1538
        %v1635 = vpop.f32.mrf.mxu0
        %v1636 = vadd.f32 0.0, %v1635
        %1637 = vmatmul.f32.gmra.mxu0 %v1540
        %v1638 = vpop.f32.mrf.mxu0
        %v1639 = vadd.f32 0.0, %v1638
        %1640 = vmatmul.f32.gmra.mxu0 %v1542
        %v1641 = vpop.f32.mrf.mxu0
        %v1642 = vadd.f32 0.0, %v1641
        %1643 = vmatmul.f32.gmra.mxu0 %v1544
        %v1644 = vpop.f32.mrf.mxu0
        %v1645 = vadd.f32 0.0, %v1644
        %1646 = vmatmul.f32.gmra.mxu0 %v1546
        %v1647 = vpop.f32.mrf.mxu0
        %v1648 = vadd.f32 0.0, %v1647
        %1649 = vmatmul.f32.gmra.mxu0 %v1548
        %v1650 = vpop.f32.mrf.mxu0
        %v1651 = vadd.f32 0.0, %v1650
        %1652 = vmatmul.f32.gmra.mxu0 %v1550
        %v1653 = vpop.f32.mrf.mxu0
        %v1654 = vadd.f32 0.0, %v1653
        %1655 = vmatmul.f32.gmra.mxu0 %v1552
        %v1656 = vpop.f32.mrf.mxu0
        %v1657 = vadd.f32 0.0, %v1656
        %1658 = vmatmul.f32.gmra.mxu0 %v1554
        %v1659 = vpop.f32.mrf.mxu0
        %v1660 = vadd.f32 0.0, %v1659
        %1661 = vmatmul.f32.gmra.mxu0 %v1556
        %v1662 = vpop.f32.mrf.mxu0
        %v1663 = vadd.f32 0.0, %v1662
        %1664 = vmatmul.f32.gmra.mxu0 %v1558
        %v1665 = vpop.f32.mrf.mxu0
        %v1666 = vadd.f32 0.0, %v1665
        %1667 = vmatmul.f32.gmra.mxu0 %v1560
        %v1668 = vpop.f32.mrf.mxu0
        %v1669 = vadd.f32 0.0, %v1668
        %1670 = vmatmul.f32.gmra.mxu0 %v1562
        %v1671 = vpop.f32.mrf.mxu0
        %v1672 = vadd.f32 0.0, %v1671
        %1673 = vmatmul.f32.gmra.mxu0 %v1564
        %v1674 = vpop.f32.mrf.mxu0
        %v1675 = vadd.f32 0.0, %v1674
        %1676 = vmatmul.f32.gmra.mxu0 %v1566
        %v1677 = vpop.f32.mrf.mxu0
        %v1678 = vadd.f32 0.0, %v1677
        %1679 = vmatmul.f32.gmra.mxu0 %v1568
        %v1680 = vpop.f32.mrf.mxu0
        %v1681 = vadd.f32 0.0, %v1680
        %1682 = vdwg.mxu0
        %1683 = vmatpush.msra.mxu0 %v1504
        %1684 = vmatpush.msra.mxu0 %v1501
        %1685 = vmatpush.msra.mxu0 %v1498
        %1686 = vmatpush.msra.mxu0 %v1495
        %1687 = vmatpush.msra.mxu0 %v1492
        %1688 = vmatpush.msra.mxu0 %v1489
        %1689 = vmatpush.msra.mxu0 %v1486
        %1690 = vmatpush.msra.mxu0 %v1483
        %1691 = vmatpush.msra.mxu0 %v1480
        %1692 = vmatpush.msra.mxu0 %v1477
        %1693 = vmatpush.msra.mxu0 %v1474
        %1694 = vmatpush.msra.mxu0 %v1471
        %1695 = vmatpush.msra.mxu0 %v1468
        %1696 = vmatpush.msra.mxu0 %v1465
        %1697 = vmatpush.msra.mxu0 %v1462
        %1698 = vmatpush.msra.mxu0 %v1459
        %1699 = vmatmul.f32.gmra.mxu0 %v1507
        %v1700 = vpop.f32.mrf.mxu0
        %v1701 = vadd.f32 %v1588, %v1700
        %1702 = vmatmul.f32.gmra.mxu0 %v1509
        %v1703 = vpop.f32.mrf.mxu0
        %v1704 = vadd.f32 %v1591, %v1703
        %1705 = vmatmul.f32.gmra.mxu0 %v1511
        %v1706 = vpop.f32.mrf.mxu0
        %v1707 = vadd.f32 %v1594, %v1706
        %1708 = vmatmul.f32.gmra.mxu0 %v1513
        %v1709 = vpop.f32.mrf.mxu0
        %v1710 = vadd.f32 %v1597, %v1709
        %1711 = vmatmul.f32.gmra.mxu0 %v1515
        %v1712 = vpop.f32.mrf.mxu0
        %v1713 = vadd.f32 %v1600, %v1712
        %1714 = vmatmul.f32.gmra.mxu0 %v1517
        %v1715 = vpop.f32.mrf.mxu0
        %v1716 = vadd.f32 %v1603, %v1715
        %1717 = vmatmul.f32.gmra.mxu0 %v1519
        %v1718 = vpop.f32.mrf.mxu0
        %v1719 = vadd.f32 %v1606, %v1718
        %1720 = vmatmul.f32.gmra.mxu0 %v1521
        %v1721 = vpop.f32.mrf.mxu0
        %v1722 = vadd.f32 %v1609, %v1721
        %1723 = vmatmul.f32.gmra.mxu0 %v1523
        %v1724 = vpop.f32.mrf.mxu0
        %v1725 = vadd.f32 %v1612, %v1724
        %1726 = vmatmul.f32.gmra.mxu0 %v1525
        %v1727 = vpop.f32.mrf.mxu0
        %v1728 = vadd.f32 %v1615, %v1727
        %1729 = vmatmul.f32.gmra.mxu0 %v1527
        %v1730 = vpop.f32.mrf.mxu0
        %v1731 = vadd.f32 %v1618, %v1730
        %1732 = vmatmul.f32.gmra.mxu0 %v1529
        %v1733 = vpop.f32.mrf.mxu0
        %v1734 = vadd.f32 %v1621, %v1733
        %1735 = vmatmul.f32.gmra.mxu0 %v1531
        %v1736 = vpop.f32.mrf.mxu0
        %v1737 = vadd.f32 %v1624, %v1736
        %1738 = vmatmul.f32.gmra.mxu0 %v1533
        %v1739 = vpop.f32.mrf.mxu0
        %v1740 = vadd.f32 %v1627, %v1739
        %1741 = vmatmul.f32.gmra.mxu0 %v1535
        %v1742 = vpop.f32.mrf.mxu0
        %v1743 = vadd.f32 %v1630, %v1742
        %1744 = vmatmul.f32.gmra.mxu0 %v1537
        %v1745 = vpop.f32.mrf.mxu0
        %v1746 = vadd.f32 %v1633, %v1745
        %1747 = vmatmul.f32.gmra.mxu0 %v1539
        %v1748 = vpop.f32.mrf.mxu0
        %v1749 = vadd.f32 %v1636, %v1748
        %1750 = vmatmul.f32.gmra.mxu0 %v1541
        %v1751 = vpop.f32.mrf.mxu0
        %v1752 = vadd.f32 %v1639, %v1751
        %1753 = vmatmul.f32.gmra.mxu0 %v1543
        %v1754 = vpop.f32.mrf.mxu0
        %v1755 = vadd.f32 %v1642, %v1754
        %1756 = vmatmul.f32.gmra.mxu0 %v1545
        %v1757 = vpop.f32.mrf.mxu0
        %v1758 = vadd.f32 %v1645, %v1757
        %1759 = vmatmul.f32.gmra.mxu0 %v1547
        %v1760 = vpop.f32.mrf.mxu0
        %v1761 = vadd.f32 %v1648, %v1760
        %1762 = vmatmul.f32.gmra.mxu0 %v1549
        %v1763 = vpop.f32.mrf.mxu0
        %v1764 = vadd.f32 %v1651, %v1763
        %1765 = vmatmul.f32.gmra.mxu0 %v1551
        %v1766 = vpop.f32.mrf.mxu0
        %v1767 = vadd.f32 %v1654, %v1766
        %1768 = vmatmul.f32.gmra.mxu0 %v1553
        %v1769 = vpop.f32.mrf.mxu0
        %v1770 = vadd.f32 %v1657, %v1769
        %1771 = vmatmul.f32.gmra.mxu0 %v1555
        %v1772 = vpop.f32.mrf.mxu0
        %v1773 = vadd.f32 %v1660, %v1772
        %1774 = vmatmul.f32.gmra.mxu0 %v1557
        %v1775 = vpop.f32.mrf.mxu0
        %v1776 = vadd.f32 %v1663, %v1775
        %1777 = vmatmul.f32.gmra.mxu0 %v1559
        %v1778 = vpop.f32.mrf.mxu0
        %v1779 = vadd.f32 %v1666, %v1778
        %1780 = vmatmul.f32.gmra.mxu0 %v1561
        %v1781 = vpop.f32.mrf.mxu0
        %v1782 = vadd.f32 %v1669, %v1781
        %1783 = vmatmul.f32.gmra.mxu0 %v1563
        %v1784 = vpop.f32.mrf.mxu0
        %v1785 = vadd.f32 %v1672, %v1784
        %1786 = vmatmul.f32.gmra.mxu0 %v1565
        %v1787 = vpop.f32.mrf.mxu0
        %v1788 = vadd.f32 %v1675, %v1787
        %1789 = vmatmul.f32.gmra.mxu0 %v1567
        %v1790 = vpop.f32.mrf.mxu0
        %v1791 = vadd.f32 %v1678, %v1790
        %1792 = vmatmul.f32.gmra.mxu0 %v1569
        %v1793 = vpop.f32.mrf.mxu0
        %v1794 = vadd.f32 %v1681, %v1793
        %1795 = vdwg.mxu0
        %1796 = vxpose.xlu0.b32.start [1/16] %v1701, 128
        %1797 = vxpose.xlu0.b32.cont [2/16] %v1704, 128
        %1798 = vxpose.xlu0.b32.cont [3/16] %v1707, 128
        %1799 = vxpose.xlu0.b32.cont [4/16] %v1710, 128
        %1800 = vxpose.xlu0.b32.cont [5/16] %v1713, 128
        %1801 = vxpose.xlu0.b32.cont [6/16] %v1716, 128
        %1802 = vxpose.xlu0.b32.cont [7/16] %v1719, 128
        %1803 = vxpose.xlu0.b32.cont [8/16] %v1722, 128
        %1804 = vxpose.xlu0.b32.cont [9/16] %v1725, 128
        %1805 = vxpose.xlu0.b32.cont [10/16] %v1728, 128
        %1806 = vxpose.xlu0.b32.cont [11/16] %v1731, 128
        %1807 = vxpose.xlu0.b32.cont [12/16] %v1734, 128
        %1808 = vxpose.xlu0.b32.cont [13/16] %v1737, 128
        %1809 = vxpose.xlu0.b32.cont [14/16] %v1740, 128
        %1810 = vxpose.xlu0.b32.cont [15/16] %v1743, 128
        %1811 = vxpose.xlu0.b32.end [16/16] %v1746, 128
        %v1812 = vpop.trf.xlu0
        %v1813 = vpop.trf.xlu0
        %v1814 = vpop.trf.xlu0
        %v1815 = vpop.trf.xlu0
        %v1816 = vpop.trf.xlu0
        %v1817 = vpop.trf.xlu0
        %v1818 = vpop.trf.xlu0
        %v1819 = vpop.trf.xlu0
        %v1820 = vpop.trf.xlu0
        %v1821 = vpop.trf.xlu0
        %v1822 = vpop.trf.xlu0
        %v1823 = vpop.trf.xlu0
        %v1824 = vpop.trf.xlu0
        %v1825 = vpop.trf.xlu0
        %v1826 = vpop.trf.xlu0
        %v1827 = vpop.trf.xlu0
        %1828 = vxpose.xlu0.b32.start [1/16] %v1749, 128
        %1829 = vxpose.xlu0.b32.cont [2/16] %v1752, 128
        %1830 = vxpose.xlu0.b32.cont [3/16] %v1755, 128
        %1831 = vxpose.xlu0.b32.cont [4/16] %v1758, 128
        %1832 = vxpose.xlu0.b32.cont [5/16] %v1761, 128
        %1833 = vxpose.xlu0.b32.cont [6/16] %v1764, 128
        %1834 = vxpose.xlu0.b32.cont [7/16] %v1767, 128
        %1835 = vxpose.xlu0.b32.cont [8/16] %v1770, 128
        %1836 = vxpose.xlu0.b32.cont [9/16] %v1773, 128
        %1837 = vxpose.xlu0.b32.cont [10/16] %v1776, 128
        %1838 = vxpose.xlu0.b32.cont [11/16] %v1779, 128
        %1839 = vxpose.xlu0.b32.cont [12/16] %v1782, 128
        %1840 = vxpose.xlu0.b32.cont [13/16] %v1785, 128
        %1841 = vxpose.xlu0.b32.cont [14/16] %v1788, 128
        %1842 = vxpose.xlu0.b32.cont [15/16] %v1791, 128
        %1843 = vxpose.xlu0.b32.end [16/16] %v1794, 128
        %v1844 = vpop.trf.xlu0
        %v1845 = vpop.trf.xlu0
        %v1846 = vpop.trf.xlu0
        %v1847 = vpop.trf.xlu0
        %v1848 = vpop.trf.xlu0
        %v1849 = vpop.trf.xlu0
        %v1850 = vpop.trf.xlu0
        %v1851 = vpop.trf.xlu0
        %v1852 = vpop.trf.xlu0
        %v1853 = vpop.trf.xlu0
        %v1854 = vpop.trf.xlu0
        %v1855 = vpop.trf.xlu0
        %v1856 = vpop.trf.xlu0
        %v1857 = vpop.trf.xlu0
        %v1858 = vpop.trf.xlu0
        %v1859 = vpop.trf.xlu0
        %v1860 = vld [vmem:[%s3] sm:$0x3]
        %v1862 = vperm.slane %v1860, 0
        %v1863 = vperm.slane %v1860, 1
        %v1866 = vadd.f32 %v1812, %v1862
        %v1867 = vadd.f32 %v1844, %v1863
        %v1868 = vadd.f32 %v1813, %v1862
        %v1869 = vadd.f32 %v1845, %v1863
        %1870 = vst [vmem:[%s250] sm:$0xff] %v1866
        %1871 = vst [vmem:[%s250 + $0x8] sm:$0xff] %v1867
        %1872 = vst [vmem:[%s250 + $0x10] sm:$0xff] %v1868
        %1873 = vst [vmem:[%s250 + $0x18] sm:$0xff] %v1869
        %s1874 = sand.u32 %s119, 1
        %s1875 = scalar_lea.sflag [#allocation4], %s1874
        %s1876 = sand.u32 %s119, 1
        %s1877 = smul.addr %s1876, 32
        %s1878 = scalar_lea.vmem [#allocation8], %s1877
        // Predicated region
        $region49: #{tpu_custom_call.1} parent=35 // pred_check
          %p1879 = pneg %p129
        $region50: #{tpu_custom_call.1} parent=35 // pred_check_branch
          %1881 = sbr.rel (%p1879) target = $region52
        $region51: #{tpu_custom_call.1} parent=35 // pred_region
          %1883 = vsyncadd %s1875, 0
          %s1884 = smul.addr %s22, 4
          %s1885 = smul.addr %s1884, 8
          %s1886 = scalar_lea.hbm %s4, %s1885
          %s1887 = sshll.u32 %s1878, 4
          %s1888 = int_to_ptr.vmem [resolvable:$true] %s1887
          %s1889 = sshll.u32 %s1886, 4
          %s1890 = int_to_ptr.hbm [resolvable:$true] %s1889
          %1895 = dma.vmem_to_hbm [thread:$0]  %s1888, 512, %s1890, %s1875, 256, 256, 16
        $region52: #{tpu_custom_call.1} parent=35 // pred_fallthru
          _
      $region36: #{tpu_custom_call.1} parent=5 // pred_fallthru
        _
      %p1896 = scmp.le.s32.totalorder 2, %s17
      // Predicated region
      $region53: #{tpu_custom_call.1} parent=5 // pred_check
        %p1897 = pneg %p1896
      $region54: #{tpu_custom_call.1} parent=5 // pred_check_branch
        %1899 = sbr.rel (%p1897) target = $region56
      $region55: #{tpu_custom_call.1} parent=5 // pred_region
        %s1900 = ssub.s32 %s17, 2
        // Predicated region
        $region57: #{tpu_custom_call.1} parent=55 // pred_check
          %p1901 = pneg %p135
        $region58: #{tpu_custom_call.1} parent=55 // pred_check_branch
          %1903 = sbr.rel (%p1901) target = $region60
        $region59: #{tpu_custom_call.1} parent=55 // pred_region
          %s1904 = sand.u32 %s120, 1
          %s1905 = scalar_lea.sflag [#allocation4], %s1904
          %s1906 = sand.u32 %s120, 1
          %s1907 = smul.addr %s1906, 32
          %s1908 = scalar_lea.vmem [#allocation8], %s1907
          %1910 = dma.done %s1905, 512
        $region60: #{tpu_custom_call.1} parent=55 // pred_fallthru
          _
      $region56: #{tpu_custom_call.1} parent=5 // pred_fallthru
        _
    $region6: #{tpu_custom_call.1} parent=1 // loop_footer
      %s21 = sadd.s32 1, %s17
    $region7: #{tpu_custom_call.1} parent=1 // loop_footer_branch
      %16 = sbr.rel target = $region3
    $region8: #{tpu_custom_call.1} parent=1 // loop_exit
      _
    %1911 = vsyncpa [#allocation3], 1
    %s1912 = scalar_lea.sflag [#allocation3], 1
    %1913 = vsyncpa %s1912, 1
    %1914 = vsyncpa [#allocation6], 1
    %1915 = vsyncpa [#allocation4], 1
    %s1916 = scalar_lea.sflag [#allocation4], 1
    %1917 = vsyncpa %s1916, 1

</llo_original>
